<compile_context>
chip_gen: v5e
topology: v5e:2x2
jax: 0.10.0
libtpu: 0.0.40
codegen_flags: <defaults>
</compile_context>

<pallas_src>
import jax
import jax.numpy as jnp
from jax.experimental import pallas as pl
from jax.experimental.pallas import tpu as pltpu


# Gate-plane order inside the packed weights: i, f, o (sigmoid group) then g (tanh).
_PLANE_TO_TORCH_GATE = (0, 1, 3, 2)   # PyTorch gate order is i, f, g, o


def _lstm_fc_kernel(x_ref, wbig_ref, winj_ref, binj_ref, fcw_ref, fcb_ref,
                    out_ref, xinj_ref):
    """Wavefront stacked-LSTM + final FC; all state lane-packed, no lane shuffles.

    x_ref:    [T, Bp, 1]       time-major input, batch padded to Bp (multiple of 8)
    wbig_ref: [L*H, 4*L*H]     recurrent/inter-layer weights, plane layout [i|f|o|g],
                               layer-packed inside each plane (zero rows elsewhere)
    winj_ref: [1, 1, 4*L*H]    layer-0 input weights scattered into plane layout
    binj_ref: [1, 1, 4*L*H]    all layers' (b_ih + b_hh) in plane layout
    fcw_ref:  [O, H]           final linear weight (PyTorch layout)
    fcb_ref:  [1, O]           final linear bias
    out_ref:  [Bp, O]          fc(out[:, -1, :])
    xinj_ref: [T, Bp, 4*L*H]   VMEM scratch: per-timestep input injection + biases
    """
    T, Bp, I = x_ref.shape
    O, H = fcw_ref.shape
    LH = wbig_ref.shape[0]            # L * H
    L = LH // H
    P = wbig_ref.shape[1]             # 4 * L * H
    f32 = jnp.float32

    # ---- layer-0 input projection + all biases, off the recurrent chain ----
    # input_size == 1  =>  pure VPU broadcast-multiply, no degenerate K=1 GEMM.
    # winj is zero outside layer-0's plane slots, so for layers 1..L-1 xinj[t] is
    # just the (timestep-invariant) bias.
    # TODO(synk): input_size > 1 would need a real [I, 4*L*H] projection GEMM here.
    xinj_ref[...] = x_ref[...] * winj_ref[...] + binj_ref[...]

    # ---- lane-packed state: one [Bp, L*H] vreg each for h and c ----
    h_all = jnp.zeros((Bp, LH), f32)
    c_all = jnp.zeros((Bp, LH), f32)
    lane = jax.lax.broadcasted_iota(jnp.int32, (Bp, LH), 1)

    # ---- wavefront over (layer, time): at step w, layer l runs t = w - l ----
    # Per step: 1 MXU dot, 1 full-width add, 3 batched transcendental regions,
    # a handful of full-vreg VPU ops.  Fully unrolled (T + L - 1 = 11 steps).
    for w in range(T + L - 1):
        lo = max(0, w - T + 1)        # lowest active layer this step
        hi = min(L - 1, w)            # highest active layer this step
        t0 = min(w, T - 1)            # layer-0 timestep (clamped; stale part masked)

        # Weights fed from the ref at use-site (no long-lived hoisted weight values).
        gates = (jnp.dot(h_all, wbig_ref[...], preferred_element_type=f32)
                 + xinj_ref[t0])                                   # [Bp, 4*L*H]

        sig = jax.nn.sigmoid(gates[:, 0:3 * LH])                   # i | f | o planes
        g_all = jnp.tanh(gates[:, 3 * LH:4 * LH])                  # g plane
        i_all = sig[:, 0:LH]
        f_all = sig[:, LH:2 * LH]
        o_all = sig[:, 2 * LH:3 * LH]

        c_new = f_all * c_all + i_all * g_all                      # all layers at once
        h_new = o_all * jnp.tanh(c_new)                            # ONE tanh per step

        if lo == 0 and hi == L - 1:
            h_all, c_all = h_new, c_new                            # full-vreg update
        else:
            # Ramp step: keep inactive layers' lanes (contiguous lane range mask).
            m = (lane >= lo * H) & (lane < (hi + 1) * H)
            h_all = jnp.where(m, h_new, h_all)
            c_all = jnp.where(m, c_new, c_all)

    # ---- final FC on the top layer's last hidden state ----
    h_top = h_all[:, (L - 1) * H:L * H]                            # [Bp, H]
    if O == 1:
        # VPU multiply + lane reduction instead of an N=1 MXU matmul.
        out_ref[...] = (jnp.sum(h_top * fcw_ref[...], axis=-1, keepdims=True)
                        + fcb_ref[...])
    else:
        out_ref[...] = (jax.lax.dot_general(
            h_top, fcw_ref[...], (((1,), (1,)), ((), ())),
            preferred_element_type=f32) + fcb_ref[...])


def lstm_model_forward(x, kparams):
    """x: [B, T, I] (PyTorch batch_first). Returns [B, O]."""
    B, T, I = x.shape
    O = kparams["fcw"].shape[0]
    P = kparams["wbig"].shape[1]

    # Pad batch up to a full f32 sublane tile (8) so vregs / MXU rows are dense.
    Bp = max(8, ((B + 7) // 8) * 8)
    xt = jnp.transpose(x, (1, 0, 2))                               # time-major [T,B,I]
    if Bp != B:
        xt = jnp.pad(xt, ((0, 0), (0, Bp - B), (0, 0)))

    args = (xt, kparams["wbig"], kparams["winj"], kparams["binj"],
            kparams["fcw"], kparams["fcb"])

    def full_spec(a):
        nd = a.ndim
        return pl.BlockSpec(a.shape, lambda i, nd=nd: (0,) * nd)

    grid_spec = pltpu.PrefetchScalarGridSpec(
        num_scalar_prefetch=0,
        # TODO(synk): for B >= 16 add a batch grid axis with
        # dimension_semantics=("parallel", ...) to use v7x's second TensorCore.
        grid=(1,),
        in_specs=[full_spec(a) for a in args],
        out_specs=pl.BlockSpec((Bp, O), lambda i: (0, 0)),
        scratch_shapes=[pltpu.VMEM((T, Bp, P), jnp.float32)],      # xinj (~128 KiB)
    )

    out = pl.pallas_call(
        _lstm_fc_kernel,
        out_shape=jax.ShapeDtypeStruct((Bp, O), jnp.float32),
        grid_spec=grid_spec,
        compiler_params=pltpu.CompilerParams(
            dimension_semantics=("arbitrary",)),
    )(*args)
    return out[:B]


def init_params(key, input_size, hidden_size, num_layers, output_size):
    """Raw PyTorch-shaped LSTM + Linear params (uniform(-1/sqrt(H), 1/sqrt(H)))."""
    H, I, O, L = hidden_size, input_size, output_size, num_layers
    k = 1.0 / jnp.sqrt(jnp.float32(H))
    keys = jax.random.split(key, 4 * L + 2)
    u = lambda kk, shape: jax.random.uniform(kk, shape, jnp.float32, -k, k)
    p = {"w_ih": [], "w_hh": [], "b": []}
    for l in range(L):
        in_f = I if l == 0 else H
        p["w_ih"].append(u(keys[4 * l + 0], (4 * H, in_f)))
        p["w_hh"].append(u(keys[4 * l + 1], (4 * H, H)))
        p["b"].append(u(keys[4 * l + 2], (4 * H,)) + u(keys[4 * l + 3], (4 * H,)))
    p["fc_w"] = u(keys[-2], (O, H))
    p["fc_b"] = u(keys[-1], (O,))
    return p


def prepare_kernel_params(raw, input_size, hidden_size, num_layers, output_size):
    """Pack raw PyTorch weights into the kernel's plane-major wide layout."""
    H, L, I, O = hidden_size, num_layers, input_size, output_size
    if I != 1:
        # TODO(synk): input_size > 1 needs a real input-projection GEMM in-kernel.
        raise NotImplementedError("kernel implements input_size == 1 (module spec)")
    LH = L * H
    P = 4 * LH
    wbig = jnp.zeros((LH, P), jnp.float32)
    winj = jnp.zeros((I, P), jnp.float32)
    binj = jnp.zeros((P,), jnp.float32)
    for l in range(L):
        w_ih, w_hh, b = raw["w_ih"][l], raw["w_hh"][l], raw["b"][l]
        for k, gt in enumerate(_PLANE_TO_TORCH_GATE):
            c0 = k * LH + l * H
            wbig = wbig.at[l * H:(l + 1) * H, c0:c0 + H].set(
                w_hh[gt * H:(gt + 1) * H, :].T)
            if l == 0:
                winj = winj.at[:, c0:c0 + H].set(w_ih[gt * H:(gt + 1) * H, :].T)
            else:
                wbig = wbig.at[(l - 1) * H:l * H, c0:c0 + H].set(
                    w_ih[gt * H:(gt + 1) * H, :].T)
            binj = binj.at[c0:c0 + H].set(b[gt * H:(gt + 1) * H])
    return {
        "wbig": wbig,                              # [L*H, 4*L*H]
        "winj": winj.reshape(1, 1, P),             # [1, 1, 4*L*H]
        "binj": binj.reshape(1, 1, P),             # [1, 1, 4*L*H]
        "fcw": raw["fc_w"],                        # [O, H]
        "fcb": raw["fc_b"].reshape(1, O),          # [1, O]
    }


def reference_forward(x, raw):
    """Pure-JAX eval-mode reference of the stacked LSTM + FC (PyTorch semantics)."""
    B, T, _ = x.shape
    L = len(raw["w_ih"])
    H = raw["w_hh"][0].shape[1]
    layer_in = x
    for l in range(L):
        w_ih, w_hh, b = raw["w_ih"][l], raw["w_hh"][l], raw["b"][l]
        h = jnp.zeros((B, H), jnp.float32)
        c = jnp.zeros((B, H), jnp.float32)
        outs = []
        for t in range(T):
            gates = layer_in[:, t, :] @ w_ih.T + h @ w_hh.T + b
            i = jax.nn.sigmoid(gates[:, 0:H])
            f = jax.nn.sigmoid(gates[:, H:2 * H])
            g = jnp.tanh(gates[:, 2 * H:3 * H])
            o = jax.nn.sigmoid(gates[:, 3 * H:4 * H])
            c = f * c + i * g
            h = o * jnp.tanh(c)
            outs.append(h)
        layer_in = jnp.stack(outs, axis=1)
        # nn.LSTM inter-layer dropout is identity in eval mode.
    return layer_in[:, -1, :] @ raw["fc_w"].T + raw["fc_b"]


if __name__ == "__main__":
    # Small shapes consistent with the module (input_size=1, output_size=1, 4 layers).
    B, T = 2, 8
    INPUT_SIZE, HIDDEN_SIZE, NUM_LAYERS, OUTPUT_SIZE = 1, 32, 4, 1

    key = jax.random.PRNGKey(0)
    k_x, k_p = jax.random.split(key)

    x = jax.random.normal(k_x, (B, T, INPUT_SIZE), jnp.float32)
    raw = init_params(k_p, INPUT_SIZE, HIDDEN_SIZE, NUM_LAYERS, OUTPUT_SIZE)
    kparams = prepare_kernel_params(raw, INPUT_SIZE, HIDDEN_SIZE, NUM_LAYERS,
                                    OUTPUT_SIZE)

    out = jax.block_until_ready(lstm_model_forward(x, kparams))
    ref = jax.block_until_ready(reference_forward(x, raw))

    assert out.shape == (B, OUTPUT_SIZE), out.shape
    # f32 throughout; tolerance covers the different (wide, zero-padded-K) summation
    # order of the fused gate matmul vs. the reference's split per-term dots.
    assert jnp.allclose(out, ref, atol=1e-4, rtol=1e-4), (out, ref)
    print("KERNEL_OK")
</pallas_src>

<mosaic_0001>
module attributes {stable_mosaic.version = 11 : i64} {
  func.func @_lstm_fc_kernel(%arg0: i32, %arg1: memref<8x8x1xf32, #tpu.memory_space<vmem>>, %arg2: memref<128x512xf32, #tpu.memory_space<vmem>>, %arg3: memref<1x1x512xf32, #tpu.memory_space<vmem>>, %arg4: memref<1x1x512xf32, #tpu.memory_space<vmem>>, %arg5: memref<1x32xf32, #tpu.memory_space<vmem>>, %arg6: memref<1x1xf32, #tpu.memory_space<vmem>>, %arg7: memref<8x1xf32, #tpu.memory_space<vmem>>, %arg8: memref<8x8x512xf32, #tpu.memory_space<vmem>>) attributes {dimension_semantics = [#tpu.dimension_semantics<arbitrary>], iteration_bounds = array<i64: 1>, scalar_prefetch = 0 : i64, scratch_operands = 1 : i64, tpu.core_type = #tpu.core_type<tc>, window_params = [{pipeline_mode = #tpu.pipeline_mode<synchronous>, transform_indices = @transform_0, window_bounds = array<i64: 8, 8, 1>}, {pipeline_mode = #tpu.pipeline_mode<synchronous>, transform_indices = @transform_1, window_bounds = array<i64: 128, 512>}, {pipeline_mode = #tpu.pipeline_mode<synchronous>, transform_indices = @transform_2, window_bounds = array<i64: 1, 1, 512>}, {pipeline_mode = #tpu.pipeline_mode<synchronous>, transform_indices = @transform_3, window_bounds = array<i64: 1, 1, 512>}, {pipeline_mode = #tpu.pipeline_mode<synchronous>, transform_indices = @transform_4, window_bounds = array<i64: 1, 32>}, {pipeline_mode = #tpu.pipeline_mode<synchronous>, transform_indices = @transform_5, window_bounds = array<i64: 1, 1>}, {pipeline_mode = #tpu.pipeline_mode<synchronous>, transform_indices = @transform_6, window_bounds = array<i64: 8, 1>}]} {
    %c0 = arith.constant 0 : index
    %c0_0 = arith.constant 0 : index
    %c0_1 = arith.constant 0 : index
    %0 = vector.load %arg1[%c0, %c0_0, %c0_1] : memref<8x8x1xf32, #tpu.memory_space<vmem>>, vector<8x8x1xf32>
    %c0_2 = arith.constant 0 : index
    %c0_3 = arith.constant 0 : index
    %c0_4 = arith.constant 0 : index
    %1 = vector.load %arg3[%c0_2, %c0_3, %c0_4] : memref<1x1x512xf32, #tpu.memory_space<vmem>>, vector<1x1x512xf32>
    %2 = vector.broadcast %0 : vector<8x8x1xf32> to vector<8x8x512xf32>
    %3 = vector.broadcast %1 : vector<1x1x512xf32> to vector<8x8x512xf32>
    %4 = arith.mulf %2, %3 : vector<8x8x512xf32>
    %c0_5 = arith.constant 0 : index
    %c0_6 = arith.constant 0 : index
    %c0_7 = arith.constant 0 : index
    %5 = vector.load %arg4[%c0_5, %c0_6, %c0_7] : memref<1x1x512xf32, #tpu.memory_space<vmem>>, vector<1x1x512xf32>
    %6 = vector.broadcast %5 : vector<1x1x512xf32> to vector<8x8x512xf32>
    %7 = arith.addf %4, %6 : vector<8x8x512xf32>
    %c0_8 = arith.constant 0 : index
    %c0_9 = arith.constant 0 : index
    %c0_10 = arith.constant 0 : index
    %8 = vector.load %arg8[%c0_8, %c0_9, %c0_10] : memref<8x8x512xf32, #tpu.memory_space<vmem>>, vector<8x8x512xf32>
    tpu.vector_store %arg8[%c0_8, %c0_9, %c0_10], %7 {strides = array<i32>} : memref<8x8x512xf32, #tpu.memory_space<vmem>>, vector<8x8x512xf32>,
    %cst = arith.constant 0.000000e+00 : f32
    %9 = vector.broadcast %cst : f32 to vector<8x128xf32>
    %cst_11 = arith.constant 0.000000e+00 : f32
    %10 = vector.broadcast %cst_11 : f32 to vector<8x128xf32>
    %11 = tpu.iota {dimensions = array<i32: 1>} : vector<8x128xi32>
    %c0_12 = arith.constant 0 : index
    %c0_13 = arith.constant 0 : index
    %12 = vector.load %arg2[%c0_12, %c0_13] : memref<128x512xf32, #tpu.memory_space<vmem>>, vector<128x512xf32>
    %cst_14 = arith.constant dense<0.000000e+00> : vector<8x512xf32>
    %13 = tpu.matmul %9, %12, %cst_14 {dimension_numbers = #tpu.dot_dimension_numbers<[1], [0], [0], [1], [0, 0, 1, 1], [], []>} : vector<8x128xf32>, vector<128x512xf32>, vector<8x512xf32> -> vector<8x512xf32>
    %c0_15 = arith.constant 0 : index
    %c0_16 = arith.constant 0 : index
    %c0_17 = arith.constant 0 : index
    %14 = vector.load %arg8[%c0_15, %c0_16, %c0_17] : memref<8x8x512xf32, #tpu.memory_space<vmem>>, vector<1x8x512xf32>
    %15 = vector.shape_cast %14 : vector<1x8x512xf32> to vector<8x512xf32>
    %16 = arith.addf %13, %15 : vector<8x512xf32>
    %17 = vector.extract_strided_slice %16 {offsets = [0, 0], sizes = [8, 384], strides = [1, 1]} : vector<8x512xf32> to vector<8x384xf32>
    %18 = arith.negf %17 : vector<8x384xf32>
    %19 = math.exp %18 : vector<8x384xf32>
    %cst_18 = arith.constant 1.000000e+00 : f32
    %20 = vector.broadcast %cst_18 : f32 to vector<8x384xf32>
    %21 = arith.addf %20, %19 : vector<8x384xf32>
    %22 = arith.divf %20, %21 : vector<8x384xf32>
    %23 = vector.extract_strided_slice %16 {offsets = [0, 384], sizes = [8, 128], strides = [1, 1]} : vector<8x512xf32> to vector<8x128xf32>
    %24 = math.tanh %23 : vector<8x128xf32>
    %25 = vector.extract_strided_slice %22 {offsets = [0, 0], sizes = [8, 128], strides = [1, 1]} : vector<8x384xf32> to vector<8x128xf32>
    %26 = vector.extract_strided_slice %22 {offsets = [0, 128], sizes = [8, 128], strides = [1, 1]} : vector<8x384xf32> to vector<8x128xf32>
    %27 = vector.extract_strided_slice %22 {offsets = [0, 256], sizes = [8, 128], strides = [1, 1]} : vector<8x384xf32> to vector<8x128xf32>
    %28 = arith.mulf %26, %10 : vector<8x128xf32>
    %29 = arith.mulf %25, %24 : vector<8x128xf32>
    %30 = arith.addf %28, %29 : vector<8x128xf32>
    %31 = math.tanh %30 : vector<8x128xf32>
    %32 = arith.mulf %27, %31 : vector<8x128xf32>
    %c0_i32 = arith.constant 0 : i32
    %33 = vector.broadcast %c0_i32 : i32 to vector<8x128xi32>
    %34 = arith.cmpi sge, %11, %33 : vector<8x128xi32>
    %c32_i32 = arith.constant 32 : i32
    %35 = vector.broadcast %c32_i32 : i32 to vector<8x128xi32>
    %36 = arith.cmpi slt, %11, %35 : vector<8x128xi32>
    %37 = arith.andi %34, %36 : vector<8x128xi1>
    %38 = arith.select %37, %32, %9 : vector<8x128xi1>, vector<8x128xf32>
    %39 = arith.select %37, %30, %10 : vector<8x128xi1>, vector<8x128xf32>
    %c0_19 = arith.constant 0 : index
    %c0_20 = arith.constant 0 : index
    %40 = vector.load %arg2[%c0_19, %c0_20] : memref<128x512xf32, #tpu.memory_space<vmem>>, vector<128x512xf32>
    %cst_21 = arith.constant dense<0.000000e+00> : vector<8x512xf32>
    %41 = tpu.matmul %38, %40, %cst_21 {dimension_numbers = #tpu.dot_dimension_numbers<[1], [0], [0], [1], [0, 0, 1, 1], [], []>} : vector<8x128xf32>, vector<128x512xf32>, vector<8x512xf32> -> vector<8x512xf32>
    %c1 = arith.constant 1 : index
    %c0_22 = arith.constant 0 : index
    %c0_23 = arith.constant 0 : index
    %42 = vector.load %arg8[%c1, %c0_22, %c0_23] : memref<8x8x512xf32, #tpu.memory_space<vmem>>, vector<1x8x512xf32>
    %43 = vector.shape_cast %42 : vector<1x8x512xf32> to vector<8x512xf32>
    %44 = arith.addf %41, %43 : vector<8x512xf32>
    %45 = vector.extract_strided_slice %44 {offsets = [0, 0], sizes = [8, 384], strides = [1, 1]} : vector<8x512xf32> to vector<8x384xf32>
    %46 = arith.negf %45 : vector<8x384xf32>
    %47 = math.exp %46 : vector<8x384xf32>
    %cst_24 = arith.constant 1.000000e+00 : f32
    %48 = vector.broadcast %cst_24 : f32 to vector<8x384xf32>
    %49 = arith.addf %48, %47 : vector<8x384xf32>
    %50 = arith.divf %48, %49 : vector<8x384xf32>
    %51 = vector.extract_strided_slice %44 {offsets = [0, 384], sizes = [8, 128], strides = [1, 1]} : vector<8x512xf32> to vector<8x128xf32>
    %52 = math.tanh %51 : vector<8x128xf32>
    %53 = vector.extract_strided_slice %50 {offsets = [0, 0], sizes = [8, 128], strides = [1, 1]} : vector<8x384xf32> to vector<8x128xf32>
    %54 = vector.extract_strided_slice %50 {offsets = [0, 128], sizes = [8, 128], strides = [1, 1]} : vector<8x384xf32> to vector<8x128xf32>
    %55 = vector.extract_strided_slice %50 {offsets = [0, 256], sizes = [8, 128], strides = [1, 1]} : vector<8x384xf32> to vector<8x128xf32>
    %56 = arith.mulf %54, %39 : vector<8x128xf32>
    %57 = arith.mulf %53, %52 : vector<8x128xf32>
    %58 = arith.addf %56, %57 : vector<8x128xf32>
    %59 = math.tanh %58 : vector<8x128xf32>
    %60 = arith.mulf %55, %59 : vector<8x128xf32>
    %c0_i32_25 = arith.constant 0 : i32
    %61 = vector.broadcast %c0_i32_25 : i32 to vector<8x128xi32>
    %62 = arith.cmpi sge, %11, %61 : vector<8x128xi32>
    %c64_i32 = arith.constant 64 : i32
    %63 = vector.broadcast %c64_i32 : i32 to vector<8x128xi32>
    %64 = arith.cmpi slt, %11, %63 : vector<8x128xi32>
    %65 = arith.andi %62, %64 : vector<8x128xi1>
    %66 = arith.select %65, %60, %38 : vector<8x128xi1>, vector<8x128xf32>
    %67 = arith.select %65, %58, %39 : vector<8x128xi1>, vector<8x128xf32>
    %c0_26 = arith.constant 0 : index
    %c0_27 = arith.constant 0 : index
    %68 = vector.load %arg2[%c0_26, %c0_27] : memref<128x512xf32, #tpu.memory_space<vmem>>, vector<128x512xf32>
    %cst_28 = arith.constant dense<0.000000e+00> : vector<8x512xf32>
    %69 = tpu.matmul %66, %68, %cst_28 {dimension_numbers = #tpu.dot_dimension_numbers<[1], [0], [0], [1], [0, 0, 1, 1], [], []>} : vector<8x128xf32>, vector<128x512xf32>, vector<8x512xf32> -> vector<8x512xf32>
    %c2 = arith.constant 2 : index
    %c0_29 = arith.constant 0 : index
    %c0_30 = arith.constant 0 : index
    %70 = vector.load %arg8[%c2, %c0_29, %c0_30] : memref<8x8x512xf32, #tpu.memory_space<vmem>>, vector<1x8x512xf32>
    %71 = vector.shape_cast %70 : vector<1x8x512xf32> to vector<8x512xf32>
    %72 = arith.addf %69, %71 : vector<8x512xf32>
    %73 = vector.extract_strided_slice %72 {offsets = [0, 0], sizes = [8, 384], strides = [1, 1]} : vector<8x512xf32> to vector<8x384xf32>
    %74 = arith.negf %73 : vector<8x384xf32>
    %75 = math.exp %74 : vector<8x384xf32>
    %cst_31 = arith.constant 1.000000e+00 : f32
    %76 = vector.broadcast %cst_31 : f32 to vector<8x384xf32>
    %77 = arith.addf %76, %75 : vector<8x384xf32>
    %78 = arith.divf %76, %77 : vector<8x384xf32>
    %79 = vector.extract_strided_slice %72 {offsets = [0, 384], sizes = [8, 128], strides = [1, 1]} : vector<8x512xf32> to vector<8x128xf32>
    %80 = math.tanh %79 : vector<8x128xf32>
    %81 = vector.extract_strided_slice %78 {offsets = [0, 0], sizes = [8, 128], strides = [1, 1]} : vector<8x384xf32> to vector<8x128xf32>
    %82 = vector.extract_strided_slice %78 {offsets = [0, 128], sizes = [8, 128], strides = [1, 1]} : vector<8x384xf32> to vector<8x128xf32>
    %83 = vector.extract_strided_slice %78 {offsets = [0, 256], sizes = [8, 128], strides = [1, 1]} : vector<8x384xf32> to vector<8x128xf32>
    %84 = arith.mulf %82, %67 : vector<8x128xf32>
    %85 = arith.mulf %81, %80 : vector<8x128xf32>
    %86 = arith.addf %84, %85 : vector<8x128xf32>
    %87 = math.tanh %86 : vector<8x128xf32>
    %88 = arith.mulf %83, %87 : vector<8x128xf32>
    %c0_i32_32 = arith.constant 0 : i32
    %89 = vector.broadcast %c0_i32_32 : i32 to vector<8x128xi32>
    %90 = arith.cmpi sge, %11, %89 : vector<8x128xi32>
    %c96_i32 = arith.constant 96 : i32
    %91 = vector.broadcast %c96_i32 : i32 to vector<8x128xi32>
    %92 = arith.cmpi slt, %11, %91 : vector<8x128xi32>
    %93 = arith.andi %90, %92 : vector<8x128xi1>
    %94 = arith.select %93, %88, %66 : vector<8x128xi1>, vector<8x128xf32>
    %95 = arith.select %93, %86, %67 : vector<8x128xi1>, vector<8x128xf32>
    %c0_33 = arith.constant 0 : index
    %c0_34 = arith.constant 0 : index
    %96 = vector.load %arg2[%c0_33, %c0_34] : memref<128x512xf32, #tpu.memory_space<vmem>>, vector<128x512xf32>
    %cst_35 = arith.constant dense<0.000000e+00> : vector<8x512xf32>
    %97 = tpu.matmul %94, %96, %cst_35 {dimension_numbers = #tpu.dot_dimension_numbers<[1], [0], [0], [1], [0, 0, 1, 1], [], []>} : vector<8x128xf32>, vector<128x512xf32>, vector<8x512xf32> -> vector<8x512xf32>
    %c3 = arith.constant 3 : index
    %c0_36 = arith.constant 0 : index
    %c0_37 = arith.constant 0 : index
    %98 = vector.load %arg8[%c3, %c0_36, %c0_37] : memref<8x8x512xf32, #tpu.memory_space<vmem>>, vector<1x8x512xf32>
    %99 = vector.shape_cast %98 : vector<1x8x512xf32> to vector<8x512xf32>
    %100 = arith.addf %97, %99 : vector<8x512xf32>
    %101 = vector.extract_strided_slice %100 {offsets = [0, 0], sizes = [8, 384], strides = [1, 1]} : vector<8x512xf32> to vector<8x384xf32>
    %102 = arith.negf %101 : vector<8x384xf32>
    %103 = math.exp %102 : vector<8x384xf32>
    %cst_38 = arith.constant 1.000000e+00 : f32
    %104 = vector.broadcast %cst_38 : f32 to vector<8x384xf32>
    %105 = arith.addf %104, %103 : vector<8x384xf32>
    %106 = arith.divf %104, %105 : vector<8x384xf32>
    %107 = vector.extract_strided_slice %100 {offsets = [0, 384], sizes = [8, 128], strides = [1, 1]} : vector<8x512xf32> to vector<8x128xf32>
    %108 = math.tanh %107 : vector<8x128xf32>
    %109 = vector.extract_strided_slice %106 {offsets = [0, 0], sizes = [8, 128], strides = [1, 1]} : vector<8x384xf32> to vector<8x128xf32>
    %110 = vector.extract_strided_slice %106 {offsets = [0, 128], sizes = [8, 128], strides = [1, 1]} : vector<8x384xf32> to vector<8x128xf32>
    %111 = vector.extract_strided_slice %106 {offsets = [0, 256], sizes = [8, 128], strides = [1, 1]} : vector<8x384xf32> to vector<8x128xf32>
    %112 = arith.mulf %110, %95 : vector<8x128xf32>
    %113 = arith.mulf %109, %108 : vector<8x128xf32>
    %114 = arith.addf %112, %113 : vector<8x128xf32>
    %115 = math.tanh %114 : vector<8x128xf32>
    %116 = arith.mulf %111, %115 : vector<8x128xf32>
    %c0_39 = arith.constant 0 : index
    %c0_40 = arith.constant 0 : index
    %117 = vector.load %arg2[%c0_39, %c0_40] : memref<128x512xf32, #tpu.memory_space<vmem>>, vector<128x512xf32>
    %cst_41 = arith.constant dense<0.000000e+00> : vector<8x512xf32>
    %118 = tpu.matmul %116, %117, %cst_41 {dimension_numbers = #tpu.dot_dimension_numbers<[1], [0], [0], [1], [0, 0, 1, 1], [], []>} : vector<8x128xf32>, vector<128x512xf32>, vector<8x512xf32> -> vector<8x512xf32>
    %c4 = arith.constant 4 : index
    %c0_42 = arith.constant 0 : index
    %c0_43 = arith.constant 0 : index
    %119 = vector.load %arg8[%c4, %c0_42, %c0_43] : memref<8x8x512xf32, #tpu.memory_space<vmem>>, vector<1x8x512xf32>
    %120 = vector.shape_cast %119 : vector<1x8x512xf32> to vector<8x512xf32>
    %121 = arith.addf %118, %120 : vector<8x512xf32>
    %122 = vector.extract_strided_slice %121 {offsets = [0, 0], sizes = [8, 384], strides = [1, 1]} : vector<8x512xf32> to vector<8x384xf32>
    %123 = arith.negf %122 : vector<8x384xf32>
    %124 = math.exp %123 : vector<8x384xf32>
    %cst_44 = arith.constant 1.000000e+00 : f32
    %125 = vector.broadcast %cst_44 : f32 to vector<8x384xf32>
    %126 = arith.addf %125, %124 : vector<8x384xf32>
    %127 = arith.divf %125, %126 : vector<8x384xf32>
    %128 = vector.extract_strided_slice %121 {offsets = [0, 384], sizes = [8, 128], strides = [1, 1]} : vector<8x512xf32> to vector<8x128xf32>
    %129 = math.tanh %128 : vector<8x128xf32>
    %130 = vector.extract_strided_slice %127 {offsets = [0, 0], sizes = [8, 128], strides = [1, 1]} : vector<8x384xf32> to vector<8x128xf32>
    %131 = vector.extract_strided_slice %127 {offsets = [0, 128], sizes = [8, 128], strides = [1, 1]} : vector<8x384xf32> to vector<8x128xf32>
    %132 = vector.extract_strided_slice %127 {offsets = [0, 256], sizes = [8, 128], strides = [1, 1]} : vector<8x384xf32> to vector<8x128xf32>
    %133 = arith.mulf %131, %114 : vector<8x128xf32>
    %134 = arith.mulf %130, %129 : vector<8x128xf32>
    %135 = arith.addf %133, %134 : vector<8x128xf32>
    %136 = math.tanh %135 : vector<8x128xf32>
    %137 = arith.mulf %132, %136 : vector<8x128xf32>
    %c0_45 = arith.constant 0 : index
    %c0_46 = arith.constant 0 : index
    %138 = vector.load %arg2[%c0_45, %c0_46] : memref<128x512xf32, #tpu.memory_space<vmem>>, vector<128x512xf32>
    %cst_47 = arith.constant dense<0.000000e+00> : vector<8x512xf32>
    %139 = tpu.matmul %137, %138, %cst_47 {dimension_numbers = #tpu.dot_dimension_numbers<[1], [0], [0], [1], [0, 0, 1, 1], [], []>} : vector<8x128xf32>, vector<128x512xf32>, vector<8x512xf32> -> vector<8x512xf32>
    %c5 = arith.constant 5 : index
    %c0_48 = arith.constant 0 : index
    %c0_49 = arith.constant 0 : index
    %140 = vector.load %arg8[%c5, %c0_48, %c0_49] : memref<8x8x512xf32, #tpu.memory_space<vmem>>, vector<1x8x512xf32>
    %141 = vector.shape_cast %140 : vector<1x8x512xf32> to vector<8x512xf32>
    %142 = arith.addf %139, %141 : vector<8x512xf32>
    %143 = vector.extract_strided_slice %142 {offsets = [0, 0], sizes = [8, 384], strides = [1, 1]} : vector<8x512xf32> to vector<8x384xf32>
    %144 = arith.negf %143 : vector<8x384xf32>
    %145 = math.exp %144 : vector<8x384xf32>
    %cst_50 = arith.constant 1.000000e+00 : f32
    %146 = vector.broadcast %cst_50 : f32 to vector<8x384xf32>
    %147 = arith.addf %146, %145 : vector<8x384xf32>
    %148 = arith.divf %146, %147 : vector<8x384xf32>
    %149 = vector.extract_strided_slice %142 {offsets = [0, 384], sizes = [8, 128], strides = [1, 1]} : vector<8x512xf32> to vector<8x128xf32>
    %150 = math.tanh %149 : vector<8x128xf32>
    %151 = vector.extract_strided_slice %148 {offsets = [0, 0], sizes = [8, 128], strides = [1, 1]} : vector<8x384xf32> to vector<8x128xf32>
    %152 = vector.extract_strided_slice %148 {offsets = [0, 128], sizes = [8, 128], strides = [1, 1]} : vector<8x384xf32> to vector<8x128xf32>
    %153 = vector.extract_strided_slice %148 {offsets = [0, 256], sizes = [8, 128], strides = [1, 1]} : vector<8x384xf32> to vector<8x128xf32>
    %154 = arith.mulf %152, %135 : vector<8x128xf32>
    %155 = arith.mulf %151, %150 : vector<8x128xf32>
    %156 = arith.addf %154, %155 : vector<8x128xf32>
    %157 = math.tanh %156 : vector<8x128xf32>
    %158 = arith.mulf %153, %157 : vector<8x128xf32>
    %c0_51 = arith.constant 0 : index
    %c0_52 = arith.constant 0 : index
    %159 = vector.load %arg2[%c0_51, %c0_52] : memref<128x512xf32, #tpu.memory_space<vmem>>, vector<128x512xf32>
    %cst_53 = arith.constant dense<0.000000e+00> : vector<8x512xf32>
    %160 = tpu.matmul %158, %159, %cst_53 {dimension_numbers = #tpu.dot_dimension_numbers<[1], [0], [0], [1], [0, 0, 1, 1], [], []>} : vector<8x128xf32>, vector<128x512xf32>, vector<8x512xf32> -> vector<8x512xf32>
    %c6 = arith.constant 6 : index
    %c0_54 = arith.constant 0 : index
    %c0_55 = arith.constant 0 : index
    %161 = vector.load %arg8[%c6, %c0_54, %c0_55] : memref<8x8x512xf32, #tpu.memory_space<vmem>>, vector<1x8x512xf32>
    %162 = vector.shape_cast %161 : vector<1x8x512xf32> to vector<8x512xf32>
    %163 = arith.addf %160, %162 : vector<8x512xf32>
    %164 = vector.extract_strided_slice %163 {offsets = [0, 0], sizes = [8, 384], strides = [1, 1]} : vector<8x512xf32> to vector<8x384xf32>
    %165 = arith.negf %164 : vector<8x384xf32>
    %166 = math.exp %165 : vector<8x384xf32>
    %cst_56 = arith.constant 1.000000e+00 : f32
    %167 = vector.broadcast %cst_56 : f32 to vector<8x384xf32>
    %168 = arith.addf %167, %166 : vector<8x384xf32>
    %169 = arith.divf %167, %168 : vector<8x384xf32>
    %170 = vector.extract_strided_slice %163 {offsets = [0, 384], sizes = [8, 128], strides = [1, 1]} : vector<8x512xf32> to vector<8x128xf32>
    %171 = math.tanh %170 : vector<8x128xf32>
    %172 = vector.extract_strided_slice %169 {offsets = [0, 0], sizes = [8, 128], strides = [1, 1]} : vector<8x384xf32> to vector<8x128xf32>
    %173 = vector.extract_strided_slice %169 {offsets = [0, 128], sizes = [8, 128], strides = [1, 1]} : vector<8x384xf32> to vector<8x128xf32>
    %174 = vector.extract_strided_slice %169 {offsets = [0, 256], sizes = [8, 128], strides = [1, 1]} : vector<8x384xf32> to vector<8x128xf32>
    %175 = arith.mulf %173, %156 : vector<8x128xf32>
    %176 = arith.mulf %172, %171 : vector<8x128xf32>
    %177 = arith.addf %175, %176 : vector<8x128xf32>
    %178 = math.tanh %177 : vector<8x128xf32>
    %179 = arith.mulf %174, %178 : vector<8x128xf32>
    %c0_57 = arith.constant 0 : index
    %c0_58 = arith.constant 0 : index
    %180 = vector.load %arg2[%c0_57, %c0_58] : memref<128x512xf32, #tpu.memory_space<vmem>>, vector<128x512xf32>
    %cst_59 = arith.constant dense<0.000000e+00> : vector<8x512xf32>
    %181 = tpu.matmul %179, %180, %cst_59 {dimension_numbers = #tpu.dot_dimension_numbers<[1], [0], [0], [1], [0, 0, 1, 1], [], []>} : vector<8x128xf32>, vector<128x512xf32>, vector<8x512xf32> -> vector<8x512xf32>
    %c7 = arith.constant 7 : index
    %c0_60 = arith.constant 0 : index
    %c0_61 = arith.constant 0 : index
    %182 = vector.load %arg8[%c7, %c0_60, %c0_61] : memref<8x8x512xf32, #tpu.memory_space<vmem>>, vector<1x8x512xf32>
    %183 = vector.shape_cast %182 : vector<1x8x512xf32> to vector<8x512xf32>
    %184 = arith.addf %181, %183 : vector<8x512xf32>
    %185 = vector.extract_strided_slice %184 {offsets = [0, 0], sizes = [8, 384], strides = [1, 1]} : vector<8x512xf32> to vector<8x384xf32>
    %186 = arith.negf %185 : vector<8x384xf32>
    %187 = math.exp %186 : vector<8x384xf32>
    %cst_62 = arith.constant 1.000000e+00 : f32
    %188 = vector.broadcast %cst_62 : f32 to vector<8x384xf32>
    %189 = arith.addf %188, %187 : vector<8x384xf32>
    %190 = arith.divf %188, %189 : vector<8x384xf32>
    %191 = vector.extract_strided_slice %184 {offsets = [0, 384], sizes = [8, 128], strides = [1, 1]} : vector<8x512xf32> to vector<8x128xf32>
    %192 = math.tanh %191 : vector<8x128xf32>
    %193 = vector.extract_strided_slice %190 {offsets = [0, 0], sizes = [8, 128], strides = [1, 1]} : vector<8x384xf32> to vector<8x128xf32>
    %194 = vector.extract_strided_slice %190 {offsets = [0, 128], sizes = [8, 128], strides = [1, 1]} : vector<8x384xf32> to vector<8x128xf32>
    %195 = vector.extract_strided_slice %190 {offsets = [0, 256], sizes = [8, 128], strides = [1, 1]} : vector<8x384xf32> to vector<8x128xf32>
    %196 = arith.mulf %194, %177 : vector<8x128xf32>
    %197 = arith.mulf %193, %192 : vector<8x128xf32>
    %198 = arith.addf %196, %197 : vector<8x128xf32>
    %199 = math.tanh %198 : vector<8x128xf32>
    %200 = arith.mulf %195, %199 : vector<8x128xf32>
    %c0_63 = arith.constant 0 : index
    %c0_64 = arith.constant 0 : index
    %201 = vector.load %arg2[%c0_63, %c0_64] : memref<128x512xf32, #tpu.memory_space<vmem>>, vector<128x512xf32>
    %cst_65 = arith.constant dense<0.000000e+00> : vector<8x512xf32>
    %202 = tpu.matmul %200, %201, %cst_65 {dimension_numbers = #tpu.dot_dimension_numbers<[1], [0], [0], [1], [0, 0, 1, 1], [], []>} : vector<8x128xf32>, vector<128x512xf32>, vector<8x512xf32> -> vector<8x512xf32>
    %c7_66 = arith.constant 7 : index
    %c0_67 = arith.constant 0 : index
    %c0_68 = arith.constant 0 : index
    %203 = vector.load %arg8[%c7_66, %c0_67, %c0_68] : memref<8x8x512xf32, #tpu.memory_space<vmem>>, vector<1x8x512xf32>
    %204 = vector.shape_cast %203 : vector<1x8x512xf32> to vector<8x512xf32>
    %205 = arith.addf %202, %204 : vector<8x512xf32>
    %206 = vector.extract_strided_slice %205 {offsets = [0, 0], sizes = [8, 384], strides = [1, 1]} : vector<8x512xf32> to vector<8x384xf32>
    %207 = arith.negf %206 : vector<8x384xf32>
    %208 = math.exp %207 : vector<8x384xf32>
    %cst_69 = arith.constant 1.000000e+00 : f32
    %209 = vector.broadcast %cst_69 : f32 to vector<8x384xf32>
    %210 = arith.addf %209, %208 : vector<8x384xf32>
    %211 = arith.divf %209, %210 : vector<8x384xf32>
    %212 = vector.extract_strided_slice %205 {offsets = [0, 384], sizes = [8, 128], strides = [1, 1]} : vector<8x512xf32> to vector<8x128xf32>
    %213 = math.tanh %212 : vector<8x128xf32>
    %214 = vector.extract_strided_slice %211 {offsets = [0, 0], sizes = [8, 128], strides = [1, 1]} : vector<8x384xf32> to vector<8x128xf32>
    %215 = vector.extract_strided_slice %211 {offsets = [0, 128], sizes = [8, 128], strides = [1, 1]} : vector<8x384xf32> to vector<8x128xf32>
    %216 = vector.extract_strided_slice %211 {offsets = [0, 256], sizes = [8, 128], strides = [1, 1]} : vector<8x384xf32> to vector<8x128xf32>
    %217 = arith.mulf %215, %198 : vector<8x128xf32>
    %218 = arith.mulf %214, %213 : vector<8x128xf32>
    %219 = arith.addf %217, %218 : vector<8x128xf32>
    %220 = math.tanh %219 : vector<8x128xf32>
    %221 = arith.mulf %216, %220 : vector<8x128xf32>
    %c32_i32_70 = arith.constant 32 : i32
    %222 = vector.broadcast %c32_i32_70 : i32 to vector<8x128xi32>
    %223 = arith.cmpi sge, %11, %222 : vector<8x128xi32>
    %c128_i32 = arith.constant 128 : i32
    %224 = vector.broadcast %c128_i32 : i32 to vector<8x128xi32>
    %225 = arith.cmpi slt, %11, %224 : vector<8x128xi32>
    %226 = arith.andi %223, %225 : vector<8x128xi1>
    %227 = arith.select %226, %221, %200 : vector<8x128xi1>, vector<8x128xf32>
    %228 = arith.select %226, %219, %198 : vector<8x128xi1>, vector<8x128xf32>
    %c0_71 = arith.constant 0 : index
    %c0_72 = arith.constant 0 : index
    %229 = vector.load %arg2[%c0_71, %c0_72] : memref<128x512xf32, #tpu.memory_space<vmem>>, vector<128x512xf32>
    %cst_73 = arith.constant dense<0.000000e+00> : vector<8x512xf32>
    %230 = tpu.matmul %227, %229, %cst_73 {dimension_numbers = #tpu.dot_dimension_numbers<[1], [0], [0], [1], [0, 0, 1, 1], [], []>} : vector<8x128xf32>, vector<128x512xf32>, vector<8x512xf32> -> vector<8x512xf32>
    %c7_74 = arith.constant 7 : index
    %c0_75 = arith.constant 0 : index
    %c0_76 = arith.constant 0 : index
    %231 = vector.load %arg8[%c7_74, %c0_75, %c0_76] : memref<8x8x512xf32, #tpu.memory_space<vmem>>, vector<1x8x512xf32>
    %232 = vector.shape_cast %231 : vector<1x8x512xf32> to vector<8x512xf32>
    %233 = arith.addf %230, %232 : vector<8x512xf32>
    %234 = vector.extract_strided_slice %233 {offsets = [0, 0], sizes = [8, 384], strides = [1, 1]} : vector<8x512xf32> to vector<8x384xf32>
    %235 = arith.negf %234 : vector<8x384xf32>
    %236 = math.exp %235 : vector<8x384xf32>
    %cst_77 = arith.constant 1.000000e+00 : f32
    %237 = vector.broadcast %cst_77 : f32 to vector<8x384xf32>
    %238 = arith.addf %237, %236 : vector<8x384xf32>
    %239 = arith.divf %237, %238 : vector<8x384xf32>
    %240 = vector.extract_strided_slice %233 {offsets = [0, 384], sizes = [8, 128], strides = [1, 1]} : vector<8x512xf32> to vector<8x128xf32>
    %241 = math.tanh %240 : vector<8x128xf32>
    %242 = vector.extract_strided_slice %239 {offsets = [0, 0], sizes = [8, 128], strides = [1, 1]} : vector<8x384xf32> to vector<8x128xf32>
    %243 = vector.extract_strided_slice %239 {offsets = [0, 128], sizes = [8, 128], strides = [1, 1]} : vector<8x384xf32> to vector<8x128xf32>
    %244 = vector.extract_strided_slice %239 {offsets = [0, 256], sizes = [8, 128], strides = [1, 1]} : vector<8x384xf32> to vector<8x128xf32>
    %245 = arith.mulf %243, %228 : vector<8x128xf32>
    %246 = arith.mulf %242, %241 : vector<8x128xf32>
    %247 = arith.addf %245, %246 : vector<8x128xf32>
    %248 = math.tanh %247 : vector<8x128xf32>
    %249 = arith.mulf %244, %248 : vector<8x128xf32>
    %c64_i32_78 = arith.constant 64 : i32
    %250 = vector.broadcast %c64_i32_78 : i32 to vector<8x128xi32>
    %251 = arith.cmpi sge, %11, %250 : vector<8x128xi32>
    %c128_i32_79 = arith.constant 128 : i32
    %252 = vector.broadcast %c128_i32_79 : i32 to vector<8x128xi32>
    %253 = arith.cmpi slt, %11, %252 : vector<8x128xi32>
    %254 = arith.andi %251, %253 : vector<8x128xi1>
    %255 = arith.select %254, %249, %227 : vector<8x128xi1>, vector<8x128xf32>
    %256 = arith.select %254, %247, %228 : vector<8x128xi1>, vector<8x128xf32>
    %c0_80 = arith.constant 0 : index
    %c0_81 = arith.constant 0 : index
    %257 = vector.load %arg2[%c0_80, %c0_81] : memref<128x512xf32, #tpu.memory_space<vmem>>, vector<128x512xf32>
    %cst_82 = arith.constant dense<0.000000e+00> : vector<8x512xf32>
    %258 = tpu.matmul %255, %257, %cst_82 {dimension_numbers = #tpu.dot_dimension_numbers<[1], [0], [0], [1], [0, 0, 1, 1], [], []>} : vector<8x128xf32>, vector<128x512xf32>, vector<8x512xf32> -> vector<8x512xf32>
    %c7_83 = arith.constant 7 : index
    %c0_84 = arith.constant 0 : index
    %c0_85 = arith.constant 0 : index
    %259 = vector.load %arg8[%c7_83, %c0_84, %c0_85] : memref<8x8x512xf32, #tpu.memory_space<vmem>>, vector<1x8x512xf32>
    %260 = vector.shape_cast %259 : vector<1x8x512xf32> to vector<8x512xf32>
    %261 = arith.addf %258, %260 : vector<8x512xf32>
    %262 = vector.extract_strided_slice %261 {offsets = [0, 0], sizes = [8, 384], strides = [1, 1]} : vector<8x512xf32> to vector<8x384xf32>
    %263 = arith.negf %262 : vector<8x384xf32>
    %264 = math.exp %263 : vector<8x384xf32>
    %cst_86 = arith.constant 1.000000e+00 : f32
    %265 = vector.broadcast %cst_86 : f32 to vector<8x384xf32>
    %266 = arith.addf %265, %264 : vector<8x384xf32>
    %267 = arith.divf %265, %266 : vector<8x384xf32>
    %268 = vector.extract_strided_slice %261 {offsets = [0, 384], sizes = [8, 128], strides = [1, 1]} : vector<8x512xf32> to vector<8x128xf32>
    %269 = math.tanh %268 : vector<8x128xf32>
    %270 = vector.extract_strided_slice %267 {offsets = [0, 0], sizes = [8, 128], strides = [1, 1]} : vector<8x384xf32> to vector<8x128xf32>
    %271 = vector.extract_strided_slice %267 {offsets = [0, 128], sizes = [8, 128], strides = [1, 1]} : vector<8x384xf32> to vector<8x128xf32>
    %272 = vector.extract_strided_slice %267 {offsets = [0, 256], sizes = [8, 128], strides = [1, 1]} : vector<8x384xf32> to vector<8x128xf32>
    %273 = arith.mulf %271, %256 : vector<8x128xf32>
    %274 = arith.mulf %270, %269 : vector<8x128xf32>
    %275 = arith.addf %273, %274 : vector<8x128xf32>
    %276 = math.tanh %275 : vector<8x128xf32>
    %277 = arith.mulf %272, %276 : vector<8x128xf32>
    %c96_i32_87 = arith.constant 96 : i32
    %278 = vector.broadcast %c96_i32_87 : i32 to vector<8x128xi32>
    %279 = arith.cmpi sge, %11, %278 : vector<8x128xi32>
    %c128_i32_88 = arith.constant 128 : i32
    %280 = vector.broadcast %c128_i32_88 : i32 to vector<8x128xi32>
    %281 = arith.cmpi slt, %11, %280 : vector<8x128xi32>
    %282 = arith.andi %279, %281 : vector<8x128xi1>
    %283 = arith.select %282, %277, %255 : vector<8x128xi1>, vector<8x128xf32>
    %284 = vector.extract_strided_slice %283 {offsets = [0, 96], sizes = [8, 32], strides = [1, 1]} : vector<8x128xf32> to vector<8x32xf32>
    %c0_89 = arith.constant 0 : index
    %c0_90 = arith.constant 0 : index
    %285 = vector.load %arg5[%c0_89, %c0_90] : memref<1x32xf32, #tpu.memory_space<vmem>>, vector<1x32xf32>
    %286 = vector.broadcast %285 : vector<1x32xf32> to vector<8x32xf32>
    %287 = arith.mulf %284, %286 : vector<8x32xf32>
    %cst_91 = arith.constant dense<0.000000e+00> : vector<8xf32>
    %288 = vector.multi_reduction <add>, %287, %cst_91 [1] : vector<8x32xf32> to vector<8xf32>
    %289 = vector.shape_cast %288 : vector<8xf32> to vector<8x1xf32>
    %c0_92 = arith.constant 0 : index
    %c0_93 = arith.constant 0 : index
    %290 = vector.load %arg6[%c0_92, %c0_93] : memref<1x1xf32, #tpu.memory_space<vmem>>, vector<1x1xf32>
    %291 = vector.broadcast %290 : vector<1x1xf32> to vector<8x1xf32>
    %292 = arith.addf %289, %291 : vector<8x1xf32>
    %c0_94 = arith.constant 0 : index
    %c0_95 = arith.constant 0 : index
    %293 = vector.load %arg7[%c0_94, %c0_95] : memref<8x1xf32, #tpu.memory_space<vmem>>, vector<8x1xf32>
    tpu.vector_store %arg7[%c0_94, %c0_95], %292 {strides = array<i32>} : memref<8x1xf32, #tpu.memory_space<vmem>>, vector<8x1xf32>,
    return
  }
  func.func @transform_0(%arg0: i32) -> (i32, i32, i32) {
    %c0_i32 = arith.constant 0 : i32
    %c0_i32_0 = arith.constant 0 : i32
    %c0_i32_1 = arith.constant 0 : i32
    %c0_i32_2 = arith.constant 0 : i32
    return %c0_i32, %c0_i32_0, %c0_i32_1 : i32, i32, i32
  }
  func.func @transform_1(%arg0: i32) -> (i32, i32) {
    %c0_i32 = arith.constant 0 : i32
    %c0_i32_0 = arith.constant 0 : i32
    %c0_i32_1 = arith.constant 0 : i32
    return %c0_i32, %c0_i32_0 : i32, i32
  }
  func.func @transform_2(%arg0: i32) -> (i32, i32, i32) {
    %c0_i32 = arith.constant 0 : i32
    %c0_i32_0 = arith.constant 0 : i32
    %c0_i32_1 = arith.constant 0 : i32
    %c0_i32_2 = arith.constant 0 : i32
    return %c0_i32, %c0_i32_0, %c0_i32_1 : i32, i32, i32
  }
  func.func @transform_3(%arg0: i32) -> (i32, i32, i32) {
    %c0_i32 = arith.constant 0 : i32
    %c0_i32_0 = arith.constant 0 : i32
    %c0_i32_1 = arith.constant 0 : i32
    %c0_i32_2 = arith.constant 0 : i32
    return %c0_i32, %c0_i32_0, %c0_i32_1 : i32, i32, i32
  }
  func.func @transform_4(%arg0: i32) -> (i32, i32) {
    %c0_i32 = arith.constant 0 : i32
    %c0_i32_0 = arith.constant 0 : i32
    %c0_i32_1 = arith.constant 0 : i32
    return %c0_i32, %c0_i32_0 : i32, i32
  }
  func.func @transform_5(%arg0: i32) -> (i32, i32) {
    %c0_i32 = arith.constant 0 : i32
    %c0_i32_0 = arith.constant 0 : i32
    %c0_i32_1 = arith.constant 0 : i32
    return %c0_i32, %c0_i32_0 : i32, i32
  }
  func.func @transform_6(%arg0: i32) -> (i32, i32) {
    %c0_i32 = arith.constant 0 : i32
    %c0_i32_0 = arith.constant 0 : i32
    %c0_i32_1 = arith.constant 0 : i32
    return %c0_i32, %c0_i32_0 : i32, i32
  }
}

</mosaic_0001>

<llo_original>
// kernel: tpu_custom_call.1
$region0: #{tpu_custom_call.1}
  #allocation0 [shape = 'u32[]', space=smem, size = 0x4, offset = 0x4, fixed_abs, tag = 'smem constant byte address 0x4 - core index']
  #allocation1 [shape = 'u32[72,128]{1,0:T(1,128)}', space=vmem, size = 0x9000, scoped, tag = 'internal scratch']
  #allocation2 [shape = 'f32[8,8,512]{2,1,0:T(8,128)}', space=vmem, size = 0x20000, scoped, tag = 'scratch operand']
  #allocation3 [shape = 'f32[1,1]{1,0:T(1,128)S(1)}', space=vmem, size = 0x200, scoped, tag = 'scoped memory for tpu_custom_call.1']
  %s0 = inlined_call_operand.vmem [shape: f32[8,8,1], index: 0, kind: input, shape index: {}]
  %s1 = inlined_call_operand.hbm [shape: f32[128,512], index: 1, kind: input, shape index: {}]
  %s2 = inlined_call_operand.vmem [shape: f32[1,1,512], index: 2, kind: input, shape index: {}]
  %s3 = inlined_call_operand.vmem [shape: f32[1,1,512], index: 3, kind: input, shape index: {}]
  %s4 = inlined_call_operand.vmem [shape: f32[1,32], index: 4, kind: input, shape index: {}]
  %s5 = inlined_call_operand.<no memory space> [shape: f32[1,1], index: 5, kind: input, shape index: {}]
  %s6 = inlined_call_operand.vmem [shape: f32[8,1], index: 6, kind: output, shape index: {}]
  %s7 = sld [smem:[#allocation0]]
  $region38: #{tpu_custom_call.1} parent=0
    _
  %s9 = ssub.s32 1, %s7
  %s10 = scalar_select 0, %s9, %s7
  %v11 = vstv %s5
  %12 = vst [vmem:[#allocation3] sm:$0x1] %v11
  $region1: #{tpu_custom_call.1} parent=0
    #allocation4 [shape = 'u8[262144]{0}', space=vmem, size = 0x40000, scoped, tag = 'input window, operand 1, single buffered']
    #allocation5 [shape = 's32[1]{0}', space=sflag, size = 0x4, scoped, tag = 'scoped memory for tpu_custom_call.1']
    %13 = vsyncpa [#allocation5], 0
    // Predicated region
    $region2: #{tpu_custom_call.1} parent=1 // pred_check
      _
    $region3: #{tpu_custom_call.1} parent=1 // pred_check_branch
      %15 = sbr.rel (0) target = $region5
    $region4: #{tpu_custom_call.1} parent=1 // pred_region
      _
    $region5: #{tpu_custom_call.1} parent=1 // pred_fallthru
      _
    // Predicated region
    $region6: #{tpu_custom_call.1} parent=1 // pred_check
      _
    $region7: #{tpu_custom_call.1} parent=1 // pred_check_branch
      %17 = sbr.rel (0) target = $region9
    $region8: #{tpu_custom_call.1} parent=1 // pred_region
      %19 = vsyncadd [#allocation5], 0
      %s20 = sshll.u32 %s1, 4
      %s21 = int_to_ptr.hbm [resolvable:$true] %s20
      %s22 = sshll.u32 [#allocation4], 4
      %s23 = int_to_ptr.vmem [resolvable:$true] %s22
      %28 = dma.hbm_to_vmem [thread:$0]  %s21, 8192, %s23, [#allocation5], 512, 512, 32
    $region9: #{tpu_custom_call.1} parent=1 // pred_fallthru
      _
    // Predicated region
    $region10: #{tpu_custom_call.1} parent=1 // pred_check
      _
    $region11: #{tpu_custom_call.1} parent=1 // pred_check_branch
      %30 = sbr.rel (0) target = $region13
    $region12: #{tpu_custom_call.1} parent=1 // pred_region
      _
    $region13: #{tpu_custom_call.1} parent=1 // pred_fallthru
      _
    // Predicated region
    $region14: #{tpu_custom_call.1} parent=1 // pred_check
      _
    $region15: #{tpu_custom_call.1} parent=1 // pred_check_branch
      %32 = sbr.rel (0) target = $region17
    $region16: #{tpu_custom_call.1} parent=1 // pred_region
      _
    $region17: #{tpu_custom_call.1} parent=1 // pred_fallthru
      _
    // Predicated region
    $region18: #{tpu_custom_call.1} parent=1 // pred_check
      _
    $region19: #{tpu_custom_call.1} parent=1 // pred_check_branch
      %34 = sbr.rel (0) target = $region21
    $region20: #{tpu_custom_call.1} parent=1 // pred_region
      _
    $region21: #{tpu_custom_call.1} parent=1 // pred_fallthru
      _
    // Predicated region
    $region22: #{tpu_custom_call.1} parent=1 // pred_check
      _
    $region23: #{tpu_custom_call.1} parent=1 // pred_check_branch
      %36 = sbr.rel (0) target = $region25
    $region24: #{tpu_custom_call.1} parent=1 // pred_region
      _
    $region25: #{tpu_custom_call.1} parent=1 // pred_fallthru
      _
    // Predicated region
    $region26: #{tpu_custom_call.1} parent=1 // pred_check
      _
    $region27: #{tpu_custom_call.1} parent=1 // pred_check_branch
      %38 = sbr.rel (0) target = $region29
    $region28: #{tpu_custom_call.1} parent=1 // pred_region
      %40 = dma.done [#allocation5], 8192
    $region29: #{tpu_custom_call.1} parent=1 // pred_fallthru
      _
    %v41 = vld [vmem:[%s0] sm:$0xff]
    %v42 = vld [vmem:[%s0 + $0x8] sm:$0xff]
    %v43 = vld [vmem:[%s0 + $0x10] sm:$0xff]
    %v44 = vld [vmem:[%s0 + $0x18] sm:$0xff]
    %v45 = vld [vmem:[%s0 + $0x20] sm:$0xff]
    %v46 = vld [vmem:[%s0 + $0x28] sm:$0xff]
    %v47 = vld [vmem:[%s0 + $0x30] sm:$0xff]
    %v48 = vld [vmem:[%s0 + $0x38] sm:$0xff]
    %v49 = vld [vmem:[%s2] sm:$0xf]
    %51 = vset.pattern.permute.xlu0 0
    %52 = vperm.xlu0 %51, %v41
    %v53 = vpop.permute.xlu0 %52
    %56 = vset.pattern.permute.xlu0 0
    %57 = vperm.xlu0 %56, %v42
    %v58 = vpop.permute.xlu0 %57
    %61 = vset.pattern.permute.xlu0 0
    %62 = vperm.xlu0 %61, %v43
    %v63 = vpop.permute.xlu0 %62
    %66 = vset.pattern.permute.xlu0 0
    %67 = vperm.xlu0 %66, %v44
    %v68 = vpop.permute.xlu0 %67
    %71 = vset.pattern.permute.xlu0 0
    %72 = vperm.xlu0 %71, %v45
    %v73 = vpop.permute.xlu0 %72
    %76 = vset.pattern.permute.xlu0 0
    %77 = vperm.xlu0 %76, %v46
    %v78 = vpop.permute.xlu0 %77
    %81 = vset.pattern.permute.xlu0 0
    %82 = vperm.xlu0 %81, %v47
    %v83 = vpop.permute.xlu0 %82
    %86 = vset.pattern.permute.xlu0 0
    %87 = vperm.xlu0 %86, %v48
    %v88 = vpop.permute.xlu0 %87
    %v91 = vperm.slane %v49, 0
    %v92 = vperm.slane %v49, 1
    %v93 = vperm.slane %v49, 2
    %v94 = vperm.slane %v49, 3
    %v99 = vmul.f32 %v53, %v91
    %v100 = vmul.f32 %v53, %v92
    %v101 = vmul.f32 %v53, %v93
    %v102 = vmul.f32 %v53, %v94
    %v103 = vmul.f32 %v58, %v91
    %v104 = vmul.f32 %v58, %v92
    %v105 = vmul.f32 %v58, %v93
    %v106 = vmul.f32 %v58, %v94
    %v107 = vmul.f32 %v63, %v91
    %v108 = vmul.f32 %v63, %v92
    %v109 = vmul.f32 %v63, %v93
    %v110 = vmul.f32 %v63, %v94
    %v111 = vmul.f32 %v68, %v91
    %v112 = vmul.f32 %v68, %v92
    %v113 = vmul.f32 %v68, %v93
    %v114 = vmul.f32 %v68, %v94
    %v115 = vmul.f32 %v73, %v91
    %v116 = vmul.f32 %v73, %v92
    %v117 = vmul.f32 %v73, %v93
    %v118 = vmul.f32 %v73, %v94
    %v119 = vmul.f32 %v78, %v91
    %v120 = vmul.f32 %v78, %v92
    %v121 = vmul.f32 %v78, %v93
    %v122 = vmul.f32 %v78, %v94
    %v123 = vmul.f32 %v83, %v91
    %v124 = vmul.f32 %v83, %v92
    %v125 = vmul.f32 %v83, %v93
    %v126 = vmul.f32 %v83, %v94
    %v127 = vmul.f32 %v88, %v91
    %v128 = vmul.f32 %v88, %v92
    %v129 = vmul.f32 %v88, %v93
    %v130 = vmul.f32 %v88, %v94
    %v131 = vld [vmem:[%s3] sm:$0xf]
    %v133 = vperm.slane %v131, 0
    %v134 = vperm.slane %v131, 1
    %v135 = vperm.slane %v131, 2
    %v136 = vperm.slane %v131, 3
    %v141 = vadd.f32 %v99, %v133
    %v142 = vadd.f32 %v100, %v134
    %v143 = vadd.f32 %v101, %v135
    %v144 = vadd.f32 %v102, %v136
    %v145 = vadd.f32 %v103, %v133
    %v146 = vadd.f32 %v104, %v134
    %v147 = vadd.f32 %v105, %v135
    %v148 = vadd.f32 %v106, %v136
    %v149 = vadd.f32 %v107, %v133
    %v150 = vadd.f32 %v108, %v134
    %v151 = vadd.f32 %v109, %v135
    %v152 = vadd.f32 %v110, %v136
    %v153 = vadd.f32 %v111, %v133
    %v154 = vadd.f32 %v112, %v134
    %v155 = vadd.f32 %v113, %v135
    %v156 = vadd.f32 %v114, %v136
    %v157 = vadd.f32 %v115, %v133
    %v158 = vadd.f32 %v116, %v134
    %v159 = vadd.f32 %v117, %v135
    %v160 = vadd.f32 %v118, %v136
    %v161 = vadd.f32 %v119, %v133
    %v162 = vadd.f32 %v120, %v134
    %v163 = vadd.f32 %v121, %v135
    %v164 = vadd.f32 %v122, %v136
    %v165 = vadd.f32 %v123, %v133
    %v166 = vadd.f32 %v124, %v134
    %v167 = vadd.f32 %v125, %v135
    %v168 = vadd.f32 %v126, %v136
    %v169 = vadd.f32 %v127, %v133
    %v170 = vadd.f32 %v128, %v134
    %v171 = vadd.f32 %v129, %v135
    %v172 = vadd.f32 %v130, %v136
    %173 = vst [vmem:[#allocation2] sm:$0xff] %v141
    %174 = vst [vmem:[#allocation2 + $0x8] sm:$0xff] %v142
    %175 = vst [vmem:[#allocation2 + $0x10] sm:$0xff] %v143
    %176 = vst [vmem:[#allocation2 + $0x18] sm:$0xff] %v144
    %177 = vst [vmem:[#allocation2 + $0x20] sm:$0xff] %v145
    %178 = vst [vmem:[#allocation2 + $0x28] sm:$0xff] %v146
    %179 = vst [vmem:[#allocation2 + $0x30] sm:$0xff] %v147
    %180 = vst [vmem:[#allocation2 + $0x38] sm:$0xff] %v148
    %181 = vst [vmem:[#allocation2 + $0x40] sm:$0xff] %v149
    %182 = vst [vmem:[#allocation2 + $0x48] sm:$0xff] %v150
    %183 = vst [vmem:[#allocation2 + $0x50] sm:$0xff] %v151
    %184 = vst [vmem:[#allocation2 + $0x58] sm:$0xff] %v152
    %185 = vst [vmem:[#allocation2 + $0x60] sm:$0xff] %v153
    %186 = vst [vmem:[#allocation2 + $0x68] sm:$0xff] %v154
    %187 = vst [vmem:[#allocation2 + $0x70] sm:$0xff] %v155
    %188 = vst [vmem:[#allocation2 + $0x78] sm:$0xff] %v156
    %189 = vst [vmem:[#allocation2 + $0x80] sm:$0xff] %v157
    %190 = vst [vmem:[#allocation2 + $0x88] sm:$0xff] %v158
    %191 = vst [vmem:[#allocation2 + $0x90] sm:$0xff] %v159
    %192 = vst [vmem:[#allocation2 + $0x98] sm:$0xff] %v160
    %193 = vst [vmem:[#allocation2 + $0xa0] sm:$0xff] %v161
    %194 = vst [vmem:[#allocation2 + $0xa8] sm:$0xff] %v162
    %195 = vst [vmem:[#allocation2 + $0xb0] sm:$0xff] %v163
    %196 = vst [vmem:[#allocation2 + $0xb8] sm:$0xff] %v164
    %197 = vst [vmem:[#allocation2 + $0xc0] sm:$0xff] %v165
    %198 = vst [vmem:[#allocation2 + $0xc8] sm:$0xff] %v166
    %199 = vst [vmem:[#allocation2 + $0xd0] sm:$0xff] %v167
    %200 = vst [vmem:[#allocation2 + $0xd8] sm:$0xff] %v168
    %201 = vst [vmem:[#allocation2 + $0xe0] sm:$0xff] %v169
    %202 = vst [vmem:[#allocation2 + $0xe8] sm:$0xff] %v170
    %203 = vst [vmem:[#allocation2 + $0xf0] sm:$0xff] %v171
    %204 = vst [vmem:[#allocation2 + $0xf8] sm:$0xff] %v172
    %v205 = vlaneseq
    %v206 = vand.u32 %v205, 127
    %v207 = vld [vmem:[#allocation4] sm:$0xff]
    %v208 = vld [vmem:[#allocation4 + $0x8] sm:$0xff]
    %v209 = vld [vmem:[#allocation4 + $0x10] sm:$0xff]
    %v210 = vld [vmem:[#allocation4 + $0x18] sm:$0xff]
    %v211 = vld [vmem:[#allocation4 + $0x20] sm:$0xff]
    %v212 = vld [vmem:[#allocation4 + $0x28] sm:$0xff]
    %v213 = vld [vmem:[#allocation4 + $0x30] sm:$0xff]
    %v214 = vld [vmem:[#allocation4 + $0x38] sm:$0xff]
    %v215 = vld [vmem:[#allocation4 + $0x40] sm:$0xff]
    %v216 = vld [vmem:[#allocation4 + $0x48] sm:$0xff]
    %v217 = vld [vmem:[#allocation4 + $0x50] sm:$0xff]
    %v218 = vld [vmem:[#allocation4 + $0x58] sm:$0xff]
    %v219 = vld [vmem:[#allocation4 + $0x60] sm:$0xff]
    %v220 = vld [vmem:[#allocation4 + $0x68] sm:$0xff]
    %v221 = vld [vmem:[#allocation4 + $0x70] sm:$0xff]
    %v222 = vld [vmem:[#allocation4 + $0x78] sm:$0xff]
    %v223 = vld [vmem:[#allocation4 + $0x80] sm:$0xff]
    %v224 = vld [vmem:[#allocation4 + $0x88] sm:$0xff]
    %v225 = vld [vmem:[#allocation4 + $0x90] sm:$0xff]
    %v226 = vld [vmem:[#allocation4 + $0x98] sm:$0xff]
    %v227 = vld [vmem:[#allocation4 + $0xa0] sm:$0xff]
    %v228 = vld [vmem:[#allocation4 + $0xa8] sm:$0xff]
    %v229 = vld [vmem:[#allocation4 + $0xb0] sm:$0xff]
    %v230 = vld [vmem:[#allocation4 + $0xb8] sm:$0xff]
    %v231 = vld [vmem:[#allocation4 + $0xc0] sm:$0xff]
    %v232 = vld [vmem:[#allocation4 + $0xc8] sm:$0xff]
    %v233 = vld [vmem:[#allocation4 + $0xd0] sm:$0xff]
    %v234 = vld [vmem:[#allocation4 + $0xd8] sm:$0xff]
    %v235 = vld [vmem:[#allocation4 + $0xe0] sm:$0xff]
    %v236 = vld [vmem:[#allocation4 + $0xe8] sm:$0xff]
    %v237 = vld [vmem:[#allocation4 + $0xf0] sm:$0xff]
    %v238 = vld [vmem:[#allocation4 + $0xf8] sm:$0xff]
    %v239 = vld [vmem:[#allocation4 + $0x100] sm:$0xff]
    %v240 = vld [vmem:[#allocation4 + $0x108] sm:$0xff]
    %v241 = vld [vmem:[#allocation4 + $0x110] sm:$0xff]
    %v242 = vld [vmem:[#allocation4 + $0x118] sm:$0xff]
    %v243 = vld [vmem:[#allocation4 + $0x120] sm:$0xff]
    %v244 = vld [vmem:[#allocation4 + $0x128] sm:$0xff]
    %v245 = vld [vmem:[#allocation4 + $0x130] sm:$0xff]
    %v246 = vld [vmem:[#allocation4 + $0x138] sm:$0xff]
    %v247 = vld [vmem:[#allocation4 + $0x140] sm:$0xff]
    %v248 = vld [vmem:[#allocation4 + $0x148] sm:$0xff]
    %v249 = vld [vmem:[#allocation4 + $0x150] sm:$0xff]
    %v250 = vld [vmem:[#allocation4 + $0x158] sm:$0xff]
    %v251 = vld [vmem:[#allocation4 + $0x160] sm:$0xff]
    %v252 = vld [vmem:[#allocation4 + $0x168] sm:$0xff]
    %v253 = vld [vmem:[#allocation4 + $0x170] sm:$0xff]
    %v254 = vld [vmem:[#allocation4 + $0x178] sm:$0xff]
    %v255 = vld [vmem:[#allocation4 + $0x180] sm:$0xff]
    %v256 = vld [vmem:[#allocation4 + $0x188] sm:$0xff]
    %v257 = vld [vmem:[#allocation4 + $0x190] sm:$0xff]
    %v258 = vld [vmem:[#allocation4 + $0x198] sm:$0xff]
    %v259 = vld [vmem:[#allocation4 + $0x1a0] sm:$0xff]
    %v260 = vld [vmem:[#allocation4 + $0x1a8] sm:$0xff]
    %v261 = vld [vmem:[#allocation4 + $0x1b0] sm:$0xff]
    %v262 = vld [vmem:[#allocation4 + $0x1b8] sm:$0xff]
    %v263 = vld [vmem:[#allocation4 + $0x1c0] sm:$0xff]
    %v264 = vld [vmem:[#allocation4 + $0x1c8] sm:$0xff]
    %v265 = vld [vmem:[#allocation4 + $0x1d0] sm:$0xff]
    %v266 = vld [vmem:[#allocation4 + $0x1d8] sm:$0xff]
    %v267 = vld [vmem:[#allocation4 + $0x1e0] sm:$0xff]
    %v268 = vld [vmem:[#allocation4 + $0x1e8] sm:$0xff]
    %v269 = vld [vmem:[#allocation4 + $0x1f0] sm:$0xff]
    %v270 = vld [vmem:[#allocation4 + $0x1f8] sm:$0xff]
    %v271 = vld [vmem:[#allocation2] sm:$0xff]
    %v272 = vld [vmem:[#allocation2 + $0x8] sm:$0xff]
    %v273 = vld [vmem:[#allocation2 + $0x10] sm:$0xff]
    %v274 = vld [vmem:[#allocation2 + $0x18] sm:$0xff]
    %275 = vmatpush.msra.mxu0 %v267
    %276 = vmatpush.msra.mxu0 %v263
    %277 = vmatpush.msra.mxu0 %v259
    %278 = vmatpush.msra.mxu0 %v255
    %279 = vmatpush.msra.mxu0 %v251
    %280 = vmatpush.msra.mxu0 %v247
    %281 = vmatpush.msra.mxu0 %v243
    %282 = vmatpush.msra.mxu0 %v239
    %283 = vmatpush.msra.mxu0 %v235
    %284 = vmatpush.msra.mxu0 %v231
    %285 = vmatpush.msra.mxu0 %v227
    %286 = vmatpush.msra.mxu0 %v223
    %287 = vmatpush.msra.mxu0 %v219
    %288 = vmatpush.msra.mxu0 %v215
    %289 = vmatpush.msra.mxu0 %v211
    %290 = vmatpush.msra.mxu0 %v207
    %291 = vmatmul.f32.gmra.mxu0 0.0
    %v292 = vpop.f32.mrf.mxu0
    %v293 = vadd.f32 %v271, %v292
    %294 = vdwg.mxu0
    %295 = vmatpush.msra.mxu0 %v268
    %296 = vmatpush.msra.mxu0 %v264
    %297 = vmatpush.msra.mxu0 %v260
    %298 = vmatpush.msra.mxu0 %v256
    %299 = vmatpush.msra.mxu0 %v252
    %300 = vmatpush.msra.mxu0 %v248
    %301 = vmatpush.msra.mxu0 %v244
    %302 = vmatpush.msra.mxu0 %v240
    %303 = vmatpush.msra.mxu0 %v236
    %304 = vmatpush.msra.mxu0 %v232
    %305 = vmatpush.msra.mxu0 %v228
    %306 = vmatpush.msra.mxu0 %v224
    %307 = vmatpush.msra.mxu0 %v220
    %308 = vmatpush.msra.mxu0 %v216
    %309 = vmatpush.msra.mxu0 %v212
    %310 = vmatpush.msra.mxu0 %v208
    %311 = vmatmul.f32.gmra.mxu0 0.0
    %v312 = vpop.f32.mrf.mxu0
    %v313 = vadd.f32 %v272, %v312
    %314 = vdwg.mxu0
    %315 = vmatpush.msra.mxu0 %v269
    %316 = vmatpush.msra.mxu0 %v265
    %317 = vmatpush.msra.mxu0 %v261
    %318 = vmatpush.msra.mxu0 %v257
    %319 = vmatpush.msra.mxu0 %v253
    %320 = vmatpush.msra.mxu0 %v249
    %321 = vmatpush.msra.mxu0 %v245
    %322 = vmatpush.msra.mxu0 %v241
    %323 = vmatpush.msra.mxu0 %v237
    %324 = vmatpush.msra.mxu0 %v233
    %325 = vmatpush.msra.mxu0 %v229
    %326 = vmatpush.msra.mxu0 %v225
    %327 = vmatpush.msra.mxu0 %v221
    %328 = vmatpush.msra.mxu0 %v217
    %329 = vmatpush.msra.mxu0 %v213
    %330 = vmatpush.msra.mxu0 %v209
    %331 = vmatmul.f32.gmra.mxu0 0.0
    %v332 = vpop.f32.mrf.mxu0
    %v333 = vadd.f32 %v273, %v332
    %334 = vdwg.mxu0
    %335 = vmatpush.msra.mxu0 %v270
    %336 = vmatpush.msra.mxu0 %v266
    %337 = vmatpush.msra.mxu0 %v262
    %338 = vmatpush.msra.mxu0 %v258
    %339 = vmatpush.msra.mxu0 %v254
    %340 = vmatpush.msra.mxu0 %v250
    %341 = vmatpush.msra.mxu0 %v246
    %342 = vmatpush.msra.mxu0 %v242
    %343 = vmatpush.msra.mxu0 %v238
    %344 = vmatpush.msra.mxu0 %v234
    %345 = vmatpush.msra.mxu0 %v230
    %346 = vmatpush.msra.mxu0 %v226
    %347 = vmatpush.msra.mxu0 %v222
    %348 = vmatpush.msra.mxu0 %v218
    %349 = vmatpush.msra.mxu0 %v214
    %350 = vmatpush.msra.mxu0 %v210
    %351 = vmatmul.f32.gmra.mxu0 0.0
    %v352 = vpop.f32.mrf.mxu0
    %v353 = vadd.f32 %v274, %v352
    %354 = vdwg.mxu0
    %v355 = vxor.u32 %v293, 2147483648
    %v356 = vxor.u32 %v313, 2147483648
    %v357 = vxor.u32 %v333, 2147483648
    %v358 = vmul.f32 %v355, 1.442695
    %v359 = vpow.pop %v358
    %v360 = vmul.f32 %v356, 1.442695
    %v361 = vpow.pop %v360
    %v362 = vmul.f32 %v357, 1.442695
    %v363 = vpow.pop %v362
    %v364 = vadd.f32 %v359, 1.0
    %v365 = vadd.f32 %v361, 1.0
    %v366 = vadd.f32 %v363, 1.0
    %v367 = vrcp.pop %v364
    %v368 = vmul.f32 %v364, %v367
    %v369 = vsub.f32 1.0, %v368
    %v370 = vmul.f32 %v367, %v369
    %v371 = vadd.f32 %v367, %v370
    %vm372 = vweird.f32 %v364
    %vm373 = vweird.f32 %v367
    %vm374 = vmor %vm372, %vm373
    %v375 = vsel %vm374, %v367, %v371
    %v376 = vand.u32 2147483647, %v364
    %vm377 = vcmp.eq.f32.partialorder %v376, 8.507059e+37
    %v378 = vand.u32 %v364, 2147483648
    %v379 = vor.u32 1.1754944e-38, %v378
    %v380 = vsel %vm377, %v379, %v375
    %v381 = vmul.f32 1.0, %v380
    %v382 = vrcp.pop %v365
    %v383 = vmul.f32 %v365, %v382
    %v384 = vsub.f32 1.0, %v383
    %v385 = vmul.f32 %v382, %v384
    %v386 = vadd.f32 %v382, %v385
    %vm387 = vweird.f32 %v365
    %vm388 = vweird.f32 %v382
    %vm389 = vmor %vm387, %vm388
    %v390 = vsel %vm389, %v382, %v386
    %v391 = vand.u32 2147483647, %v365
    %vm392 = vcmp.eq.f32.partialorder %v391, 8.507059e+37
    %v393 = vand.u32 %v365, 2147483648
    %v394 = vor.u32 1.1754944e-38, %v393
    %v395 = vsel %vm392, %v394, %v390
    %v396 = vmul.f32 1.0, %v395
    %v397 = vrcp.pop %v366
    %v398 = vmul.f32 %v366, %v397
    %v399 = vsub.f32 1.0, %v398
    %v400 = vmul.f32 %v397, %v399
    %v401 = vadd.f32 %v397, %v400
    %vm402 = vweird.f32 %v366
    %vm403 = vweird.f32 %v397
    %vm404 = vmor %vm402, %vm403
    %v405 = vsel %vm404, %v397, %v401
    %v406 = vand.u32 2147483647, %v366
    %vm407 = vcmp.eq.f32.partialorder %v406, 8.507059e+37
    %v408 = vand.u32 %v366, 2147483648
    %v409 = vor.u32 1.1754944e-38, %v408
    %v410 = vsel %vm407, %v409, %v405
    %v411 = vmul.f32 1.0, %v410
    %v412 = vtanh.pop %v353
    %v413 = vmul.f32 %v396, 0.0
    %v414 = vmul.f32 %v381, %v412
    %v415 = vadd.f32 %v413, %v414
    %v416 = vtanh.pop %v415
    %v417 = vmul.f32 %v411, %v416
    %vm418 = vcmp.ge.s32.totalorder %v206, 0
    %vm419 = vcmp.lt.s32.totalorder %v206, 32
    %vm420 = vmand %vm418, %vm419
    %v421 = vsel %vm420, %v417, 0.0
    %v422 = vsel %vm420, %v415, 0.0
    %s423 = scalar_lea.vmem [#allocation2], 32
    %v424 = vld [vmem:[%s423] sm:$0xff]
    %v425 = vld [vmem:[%s423 + $0x8] sm:$0xff]
    %v426 = vld [vmem:[%s423 + $0x10] sm:$0xff]
    %v427 = vld [vmem:[%s423 + $0x18] sm:$0xff]
    %428 = vmatpush.msra.mxu0 %v267
    %429 = vmatpush.msra.mxu0 %v263
    %430 = vmatpush.msra.mxu0 %v259
    %431 = vmatpush.msra.mxu0 %v255
    %432 = vmatpush.msra.mxu0 %v251
    %433 = vmatpush.msra.mxu0 %v247
    %434 = vmatpush.msra.mxu0 %v243
    %435 = vmatpush.msra.mxu0 %v239
    %436 = vmatpush.msra.mxu0 %v235
    %437 = vmatpush.msra.mxu0 %v231
    %438 = vmatpush.msra.mxu0 %v227
    %439 = vmatpush.msra.mxu0 %v223
    %440 = vmatpush.msra.mxu0 %v219
    %441 = vmatpush.msra.mxu0 %v215
    %442 = vmatpush.msra.mxu0 %v211
    %443 = vmatpush.msra.mxu0 %v207
    %444 = vmatmul.f32.gmra.mxu0 %v421
    %v445 = vpop.f32.mrf.mxu0
    %v446 = vadd.f32 %v424, %v445
    %447 = vdwg.mxu0
    %448 = vmatpush.msra.mxu0 %v268
    %449 = vmatpush.msra.mxu0 %v264
    %450 = vmatpush.msra.mxu0 %v260
    %451 = vmatpush.msra.mxu0 %v256
    %452 = vmatpush.msra.mxu0 %v252
    %453 = vmatpush.msra.mxu0 %v248
    %454 = vmatpush.msra.mxu0 %v244
    %455 = vmatpush.msra.mxu0 %v240
    %456 = vmatpush.msra.mxu0 %v236
    %457 = vmatpush.msra.mxu0 %v232
    %458 = vmatpush.msra.mxu0 %v228
    %459 = vmatpush.msra.mxu0 %v224
    %460 = vmatpush.msra.mxu0 %v220
    %461 = vmatpush.msra.mxu0 %v216
    %462 = vmatpush.msra.mxu0 %v212
    %463 = vmatpush.msra.mxu0 %v208
    %464 = vmatmul.f32.gmra.mxu0 %v421
    %v465 = vpop.f32.mrf.mxu0
    %v466 = vadd.f32 %v425, %v465
    %467 = vdwg.mxu0
    %468 = vmatpush.msra.mxu0 %v269
    %469 = vmatpush.msra.mxu0 %v265
    %470 = vmatpush.msra.mxu0 %v261
    %471 = vmatpush.msra.mxu0 %v257
    %472 = vmatpush.msra.mxu0 %v253
    %473 = vmatpush.msra.mxu0 %v249
    %474 = vmatpush.msra.mxu0 %v245
    %475 = vmatpush.msra.mxu0 %v241
    %476 = vmatpush.msra.mxu0 %v237
    %477 = vmatpush.msra.mxu0 %v233
    %478 = vmatpush.msra.mxu0 %v229
    %479 = vmatpush.msra.mxu0 %v225
    %480 = vmatpush.msra.mxu0 %v221
    %481 = vmatpush.msra.mxu0 %v217
    %482 = vmatpush.msra.mxu0 %v213
    %483 = vmatpush.msra.mxu0 %v209
    %484 = vmatmul.f32.gmra.mxu0 %v421
    %v485 = vpop.f32.mrf.mxu0
    %v486 = vadd.f32 %v426, %v485
    %487 = vdwg.mxu0
    %488 = vmatpush.msra.mxu0 %v270
    %489 = vmatpush.msra.mxu0 %v266
    %490 = vmatpush.msra.mxu0 %v262
    %491 = vmatpush.msra.mxu0 %v258
    %492 = vmatpush.msra.mxu0 %v254
    %493 = vmatpush.msra.mxu0 %v250
    %494 = vmatpush.msra.mxu0 %v246
    %495 = vmatpush.msra.mxu0 %v242
    %496 = vmatpush.msra.mxu0 %v238
    %497 = vmatpush.msra.mxu0 %v234
    %498 = vmatpush.msra.mxu0 %v230
    %499 = vmatpush.msra.mxu0 %v226
    %500 = vmatpush.msra.mxu0 %v222
    %501 = vmatpush.msra.mxu0 %v218
    %502 = vmatpush.msra.mxu0 %v214
    %503 = vmatpush.msra.mxu0 %v210
    %504 = vmatmul.f32.gmra.mxu0 %v421
    %v505 = vpop.f32.mrf.mxu0
    %v506 = vadd.f32 %v427, %v505
    %507 = vdwg.mxu0
    %v508 = vxor.u32 %v446, 2147483648
    %v509 = vxor.u32 %v466, 2147483648
    %v510 = vxor.u32 %v486, 2147483648
    %v511 = vmul.f32 %v508, 1.442695
    %v512 = vpow.pop %v511
    %v513 = vmul.f32 %v509, 1.442695
    %v514 = vpow.pop %v513
    %v515 = vmul.f32 %v510, 1.442695
    %v516 = vpow.pop %v515
    %v517 = vadd.f32 %v512, 1.0
    %v518 = vadd.f32 %v514, 1.0
    %v519 = vadd.f32 %v516, 1.0
    %v520 = vrcp.pop %v517
    %v521 = vmul.f32 %v517, %v520
    %v522 = vsub.f32 1.0, %v521
    %v523 = vmul.f32 %v520, %v522
    %v524 = vadd.f32 %v520, %v523
    %vm525 = vweird.f32 %v517
    %vm526 = vweird.f32 %v520
    %vm527 = vmor %vm525, %vm526
    %v528 = vsel %vm527, %v520, %v524
    %v529 = vand.u32 2147483647, %v517
    %vm530 = vcmp.eq.f32.partialorder %v529, 8.507059e+37
    %v531 = vand.u32 %v517, 2147483648
    %v532 = vor.u32 1.1754944e-38, %v531
    %v533 = vsel %vm530, %v532, %v528
    %v534 = vmul.f32 1.0, %v533
    %v535 = vrcp.pop %v518
    %v536 = vmul.f32 %v518, %v535
    %v537 = vsub.f32 1.0, %v536
    %v538 = vmul.f32 %v535, %v537
    %v539 = vadd.f32 %v535, %v538
    %vm540 = vweird.f32 %v518
    %vm541 = vweird.f32 %v535
    %vm542 = vmor %vm540, %vm541
    %v543 = vsel %vm542, %v535, %v539
    %v544 = vand.u32 2147483647, %v518
    %vm545 = vcmp.eq.f32.partialorder %v544, 8.507059e+37
    %v546 = vand.u32 %v518, 2147483648
    %v547 = vor.u32 1.1754944e-38, %v546
    %v548 = vsel %vm545, %v547, %v543
    %v549 = vmul.f32 1.0, %v548
    %v550 = vrcp.pop %v519
    %v551 = vmul.f32 %v519, %v550
    %v552 = vsub.f32 1.0, %v551
    %v553 = vmul.f32 %v550, %v552
    %v554 = vadd.f32 %v550, %v553
    %vm555 = vweird.f32 %v519
    %vm556 = vweird.f32 %v550
    %vm557 = vmor %vm555, %vm556
    %v558 = vsel %vm557, %v550, %v554
    %v559 = vand.u32 2147483647, %v519
    %vm560 = vcmp.eq.f32.partialorder %v559, 8.507059e+37
    %v561 = vand.u32 %v519, 2147483648
    %v562 = vor.u32 1.1754944e-38, %v561
    %v563 = vsel %vm560, %v562, %v558
    %v564 = vmul.f32 1.0, %v563
    %v565 = vtanh.pop %v506
    %v566 = vmul.f32 %v549, %v422
    %v567 = vmul.f32 %v534, %v565
    %v568 = vadd.f32 %v566, %v567
    %v569 = vtanh.pop %v568
    %v570 = vmul.f32 %v564, %v569
    %vm571 = vcmp.lt.s32.totalorder %v206, 64
    %vm572 = vmand %vm418, %vm571
    %v573 = vsel %vm572, %v570, %v421
    %v574 = vsel %vm572, %v568, %v422
    %s575 = scalar_lea.vmem [#allocation2], 64
    %v576 = vld [vmem:[%s575] sm:$0xff]
    %v577 = vld [vmem:[%s575 + $0x8] sm:$0xff]
    %v578 = vld [vmem:[%s575 + $0x10] sm:$0xff]
    %v579 = vld [vmem:[%s575 + $0x18] sm:$0xff]
    %580 = vmatpush.msra.mxu0 %v267
    %581 = vmatpush.msra.mxu0 %v263
    %582 = vmatpush.msra.mxu0 %v259
    %583 = vmatpush.msra.mxu0 %v255
    %584 = vmatpush.msra.mxu0 %v251
    %585 = vmatpush.msra.mxu0 %v247
    %586 = vmatpush.msra.mxu0 %v243
    %587 = vmatpush.msra.mxu0 %v239
    %588 = vmatpush.msra.mxu0 %v235
    %589 = vmatpush.msra.mxu0 %v231
    %590 = vmatpush.msra.mxu0 %v227
    %591 = vmatpush.msra.mxu0 %v223
    %592 = vmatpush.msra.mxu0 %v219
    %593 = vmatpush.msra.mxu0 %v215
    %594 = vmatpush.msra.mxu0 %v211
    %595 = vmatpush.msra.mxu0 %v207
    %596 = vmatmul.f32.gmra.mxu0 %v573
    %v597 = vpop.f32.mrf.mxu0
    %v598 = vadd.f32 %v576, %v597
    %599 = vdwg.mxu0
    %600 = vmatpush.msra.mxu0 %v268
    %601 = vmatpush.msra.mxu0 %v264
    %602 = vmatpush.msra.mxu0 %v260
    %603 = vmatpush.msra.mxu0 %v256
    %604 = vmatpush.msra.mxu0 %v252
    %605 = vmatpush.msra.mxu0 %v248
    %606 = vmatpush.msra.mxu0 %v244
    %607 = vmatpush.msra.mxu0 %v240
    %608 = vmatpush.msra.mxu0 %v236
    %609 = vmatpush.msra.mxu0 %v232
    %610 = vmatpush.msra.mxu0 %v228
    %611 = vmatpush.msra.mxu0 %v224
    %612 = vmatpush.msra.mxu0 %v220
    %613 = vmatpush.msra.mxu0 %v216
    %614 = vmatpush.msra.mxu0 %v212
    %615 = vmatpush.msra.mxu0 %v208
    %616 = vmatmul.f32.gmra.mxu0 %v573
    %v617 = vpop.f32.mrf.mxu0
    %v618 = vadd.f32 %v577, %v617
    %619 = vdwg.mxu0
    %620 = vmatpush.msra.mxu0 %v269
    %621 = vmatpush.msra.mxu0 %v265
    %622 = vmatpush.msra.mxu0 %v261
    %623 = vmatpush.msra.mxu0 %v257
    %624 = vmatpush.msra.mxu0 %v253
    %625 = vmatpush.msra.mxu0 %v249
    %626 = vmatpush.msra.mxu0 %v245
    %627 = vmatpush.msra.mxu0 %v241
    %628 = vmatpush.msra.mxu0 %v237
    %629 = vmatpush.msra.mxu0 %v233
    %630 = vmatpush.msra.mxu0 %v229
    %631 = vmatpush.msra.mxu0 %v225
    %632 = vmatpush.msra.mxu0 %v221
    %633 = vmatpush.msra.mxu0 %v217
    %634 = vmatpush.msra.mxu0 %v213
    %635 = vmatpush.msra.mxu0 %v209
    %636 = vmatmul.f32.gmra.mxu0 %v573
    %v637 = vpop.f32.mrf.mxu0
    %v638 = vadd.f32 %v578, %v637
    %639 = vdwg.mxu0
    %640 = vmatpush.msra.mxu0 %v270
    %641 = vmatpush.msra.mxu0 %v266
    %642 = vmatpush.msra.mxu0 %v262
    %643 = vmatpush.msra.mxu0 %v258
    %644 = vmatpush.msra.mxu0 %v254
    %645 = vmatpush.msra.mxu0 %v250
    %646 = vmatpush.msra.mxu0 %v246
    %647 = vmatpush.msra.mxu0 %v242
    %648 = vmatpush.msra.mxu0 %v238
    %649 = vmatpush.msra.mxu0 %v234
    %650 = vmatpush.msra.mxu0 %v230
    %651 = vmatpush.msra.mxu0 %v226
    %652 = vmatpush.msra.mxu0 %v222
    %653 = vmatpush.msra.mxu0 %v218
    %654 = vmatpush.msra.mxu0 %v214
    %655 = vmatpush.msra.mxu0 %v210
    %656 = vmatmul.f32.gmra.mxu0 %v573
    %v657 = vpop.f32.mrf.mxu0
    %v658 = vadd.f32 %v579, %v657
    %659 = vdwg.mxu0
    %v660 = vxor.u32 %v598, 2147483648
    %v661 = vxor.u32 %v618, 2147483648
    %v662 = vxor.u32 %v638, 2147483648
    %v663 = vmul.f32 %v660, 1.442695
    %v664 = vpow.pop %v663
    %v665 = vmul.f32 %v661, 1.442695
    %v666 = vpow.pop %v665
    %v667 = vmul.f32 %v662, 1.442695
    %v668 = vpow.pop %v667
    %v669 = vadd.f32 %v664, 1.0
    %v670 = vadd.f32 %v666, 1.0
    %v671 = vadd.f32 %v668, 1.0
    %v672 = vrcp.pop %v669
    %v673 = vmul.f32 %v669, %v672
    %v674 = vsub.f32 1.0, %v673
    %v675 = vmul.f32 %v672, %v674
    %v676 = vadd.f32 %v672, %v675
    %vm677 = vweird.f32 %v669
    %vm678 = vweird.f32 %v672
    %vm679 = vmor %vm677, %vm678
    %v680 = vsel %vm679, %v672, %v676
    %v681 = vand.u32 2147483647, %v669
    %vm682 = vcmp.eq.f32.partialorder %v681, 8.507059e+37
    %v683 = vand.u32 %v669, 2147483648
    %v684 = vor.u32 1.1754944e-38, %v683
    %v685 = vsel %vm682, %v684, %v680
    %v686 = vmul.f32 1.0, %v685
    %v687 = vrcp.pop %v670
    %v688 = vmul.f32 %v670, %v687
    %v689 = vsub.f32 1.0, %v688
    %v690 = vmul.f32 %v687, %v689
    %v691 = vadd.f32 %v687, %v690
    %vm692 = vweird.f32 %v670
    %vm693 = vweird.f32 %v687
    %vm694 = vmor %vm692, %vm693
    %v695 = vsel %vm694, %v687, %v691
    %v696 = vand.u32 2147483647, %v670
    %vm697 = vcmp.eq.f32.partialorder %v696, 8.507059e+37
    %v698 = vand.u32 %v670, 2147483648
    %v699 = vor.u32 1.1754944e-38, %v698
    %v700 = vsel %vm697, %v699, %v695
    %v701 = vmul.f32 1.0, %v700
    %v702 = vrcp.pop %v671
    %v703 = vmul.f32 %v671, %v702
    %v704 = vsub.f32 1.0, %v703
    %v705 = vmul.f32 %v702, %v704
    %v706 = vadd.f32 %v702, %v705
    %vm707 = vweird.f32 %v671
    %vm708 = vweird.f32 %v702
    %vm709 = vmor %vm707, %vm708
    %v710 = vsel %vm709, %v702, %v706
    %v711 = vand.u32 2147483647, %v671
    %vm712 = vcmp.eq.f32.partialorder %v711, 8.507059e+37
    %v713 = vand.u32 %v671, 2147483648
    %v714 = vor.u32 1.1754944e-38, %v713
    %v715 = vsel %vm712, %v714, %v710
    %v716 = vmul.f32 1.0, %v715
    %v717 = vtanh.pop %v658
    %v718 = vmul.f32 %v701, %v574
    %v719 = vmul.f32 %v686, %v717
    %v720 = vadd.f32 %v718, %v719
    %v721 = vtanh.pop %v720
    %v722 = vmul.f32 %v716, %v721
    %vm723 = vcmp.lt.s32.totalorder %v206, 96
    %vm724 = vmand %vm418, %vm723
    %v725 = vsel %vm724, %v722, %v573
    %v726 = vsel %vm724, %v720, %v574
    %s727 = scalar_lea.vmem [#allocation2], 96
    %v728 = vld [vmem:[%s727] sm:$0xff]
    %v729 = vld [vmem:[%s727 + $0x8] sm:$0xff]
    %v730 = vld [vmem:[%s727 + $0x10] sm:$0xff]
    %v731 = vld [vmem:[%s727 + $0x18] sm:$0xff]
    %732 = vmatpush.msra.mxu0 %v267
    %733 = vmatpush.msra.mxu0 %v263
    %734 = vmatpush.msra.mxu0 %v259
    %735 = vmatpush.msra.mxu0 %v255
    %736 = vmatpush.msra.mxu0 %v251
    %737 = vmatpush.msra.mxu0 %v247
    %738 = vmatpush.msra.mxu0 %v243
    %739 = vmatpush.msra.mxu0 %v239
    %740 = vmatpush.msra.mxu0 %v235
    %741 = vmatpush.msra.mxu0 %v231
    %742 = vmatpush.msra.mxu0 %v227
    %743 = vmatpush.msra.mxu0 %v223
    %744 = vmatpush.msra.mxu0 %v219
    %745 = vmatpush.msra.mxu0 %v215
    %746 = vmatpush.msra.mxu0 %v211
    %747 = vmatpush.msra.mxu0 %v207
    %748 = vmatmul.f32.gmra.mxu0 %v725
    %v749 = vpop.f32.mrf.mxu0
    %v750 = vadd.f32 %v728, %v749
    %751 = vdwg.mxu0
    %752 = vmatpush.msra.mxu0 %v268
    %753 = vmatpush.msra.mxu0 %v264
    %754 = vmatpush.msra.mxu0 %v260
    %755 = vmatpush.msra.mxu0 %v256
    %756 = vmatpush.msra.mxu0 %v252
    %757 = vmatpush.msra.mxu0 %v248
    %758 = vmatpush.msra.mxu0 %v244
    %759 = vmatpush.msra.mxu0 %v240
    %760 = vmatpush.msra.mxu0 %v236
    %761 = vmatpush.msra.mxu0 %v232
    %762 = vmatpush.msra.mxu0 %v228
    %763 = vmatpush.msra.mxu0 %v224
    %764 = vmatpush.msra.mxu0 %v220
    %765 = vmatpush.msra.mxu0 %v216
    %766 = vmatpush.msra.mxu0 %v212
    %767 = vmatpush.msra.mxu0 %v208
    %768 = vmatmul.f32.gmra.mxu0 %v725
    %v769 = vpop.f32.mrf.mxu0
    %v770 = vadd.f32 %v729, %v769
    %771 = vdwg.mxu0
    %772 = vmatpush.msra.mxu0 %v269
    %773 = vmatpush.msra.mxu0 %v265
    %774 = vmatpush.msra.mxu0 %v261
    %775 = vmatpush.msra.mxu0 %v257
    %776 = vmatpush.msra.mxu0 %v253
    %777 = vmatpush.msra.mxu0 %v249
    %778 = vmatpush.msra.mxu0 %v245
    %779 = vmatpush.msra.mxu0 %v241
    %780 = vmatpush.msra.mxu0 %v237
    %781 = vmatpush.msra.mxu0 %v233
    %782 = vmatpush.msra.mxu0 %v229
    %783 = vmatpush.msra.mxu0 %v225
    %784 = vmatpush.msra.mxu0 %v221
    %785 = vmatpush.msra.mxu0 %v217
    %786 = vmatpush.msra.mxu0 %v213
    %787 = vmatpush.msra.mxu0 %v209
    %788 = vmatmul.f32.gmra.mxu0 %v725
    %v789 = vpop.f32.mrf.mxu0
    %v790 = vadd.f32 %v730, %v789
    %791 = vdwg.mxu0
    %792 = vmatpush.msra.mxu0 %v270
    %793 = vmatpush.msra.mxu0 %v266
    %794 = vmatpush.msra.mxu0 %v262
    %795 = vmatpush.msra.mxu0 %v258
    %796 = vmatpush.msra.mxu0 %v254
    %797 = vmatpush.msra.mxu0 %v250
    %798 = vmatpush.msra.mxu0 %v246
    %799 = vmatpush.msra.mxu0 %v242
    %800 = vmatpush.msra.mxu0 %v238
    %801 = vmatpush.msra.mxu0 %v234
    %802 = vmatpush.msra.mxu0 %v230
    %803 = vmatpush.msra.mxu0 %v226
    %804 = vmatpush.msra.mxu0 %v222
    %805 = vmatpush.msra.mxu0 %v218
    %806 = vmatpush.msra.mxu0 %v214
    %807 = vmatpush.msra.mxu0 %v210
    %808 = vmatmul.f32.gmra.mxu0 %v725
    %v809 = vpop.f32.mrf.mxu0
    %v810 = vadd.f32 %v731, %v809
    %811 = vdwg.mxu0
    %v812 = vxor.u32 %v750, 2147483648
    %v813 = vxor.u32 %v770, 2147483648
    %v814 = vxor.u32 %v790, 2147483648
    %v815 = vmul.f32 %v812, 1.442695
    %v816 = vpow.pop %v815
    %v817 = vmul.f32 %v813, 1.442695
    %v818 = vpow.pop %v817
    %v819 = vmul.f32 %v814, 1.442695
    %v820 = vpow.pop %v819
    %v821 = vadd.f32 %v816, 1.0
    %v822 = vadd.f32 %v818, 1.0
    %v823 = vadd.f32 %v820, 1.0
    %v824 = vrcp.pop %v821
    %v825 = vmul.f32 %v821, %v824
    %v826 = vsub.f32 1.0, %v825
    %v827 = vmul.f32 %v824, %v826
    %v828 = vadd.f32 %v824, %v827
    %vm829 = vweird.f32 %v821
    %vm830 = vweird.f32 %v824
    %vm831 = vmor %vm829, %vm830
    %v832 = vsel %vm831, %v824, %v828
    %v833 = vand.u32 2147483647, %v821
    %vm834 = vcmp.eq.f32.partialorder %v833, 8.507059e+37
    %v835 = vand.u32 %v821, 2147483648
    %v836 = vor.u32 1.1754944e-38, %v835
    %v837 = vsel %vm834, %v836, %v832
    %v838 = vmul.f32 1.0, %v837
    %v839 = vrcp.pop %v822
    %v840 = vmul.f32 %v822, %v839
    %v841 = vsub.f32 1.0, %v840
    %v842 = vmul.f32 %v839, %v841
    %v843 = vadd.f32 %v839, %v842
    %vm844 = vweird.f32 %v822
    %vm845 = vweird.f32 %v839
    %vm846 = vmor %vm844, %vm845
    %v847 = vsel %vm846, %v839, %v843
    %v848 = vand.u32 2147483647, %v822
    %vm849 = vcmp.eq.f32.partialorder %v848, 8.507059e+37
    %v850 = vand.u32 %v822, 2147483648
    %v851 = vor.u32 1.1754944e-38, %v850
    %v852 = vsel %vm849, %v851, %v847
    %v853 = vmul.f32 1.0, %v852
    %v854 = vrcp.pop %v823
    %v855 = vmul.f32 %v823, %v854
    %v856 = vsub.f32 1.0, %v855
    %v857 = vmul.f32 %v854, %v856
    %v858 = vadd.f32 %v854, %v857
    %vm859 = vweird.f32 %v823
    %vm860 = vweird.f32 %v854
    %vm861 = vmor %vm859, %vm860
    %v862 = vsel %vm861, %v854, %v858
    %v863 = vand.u32 2147483647, %v823
    %vm864 = vcmp.eq.f32.partialorder %v863, 8.507059e+37
    %v865 = vand.u32 %v823, 2147483648
    %v866 = vor.u32 1.1754944e-38, %v865
    %v867 = vsel %vm864, %v866, %v862
    %v868 = vmul.f32 1.0, %v867
    %v869 = vtanh.pop %v810
    %v870 = vmul.f32 %v853, %v726
    %v871 = vmul.f32 %v838, %v869
    %v872 = vadd.f32 %v870, %v871
    %v873 = vtanh.pop %v872
    %v874 = vmul.f32 %v868, %v873
    %s875 = scalar_lea.vmem [#allocation2], 128
    %v876 = vld [vmem:[%s875] sm:$0xff]
    %v877 = vld [vmem:[%s875 + $0x8] sm:$0xff]
    %v878 = vld [vmem:[%s875 + $0x10] sm:$0xff]
    %v879 = vld [vmem:[%s875 + $0x18] sm:$0xff]
    %880 = vmatpush.msra.mxu0 %v267
    %881 = vmatpush.msra.mxu0 %v263
    %882 = vmatpush.msra.mxu0 %v259
    %883 = vmatpush.msra.mxu0 %v255
    %884 = vmatpush.msra.mxu0 %v251
    %885 = vmatpush.msra.mxu0 %v247
    %886 = vmatpush.msra.mxu0 %v243
    %887 = vmatpush.msra.mxu0 %v239
    %888 = vmatpush.msra.mxu0 %v235
    %889 = vmatpush.msra.mxu0 %v231
    %890 = vmatpush.msra.mxu0 %v227
    %891 = vmatpush.msra.mxu0 %v223
    %892 = vmatpush.msra.mxu0 %v219
    %893 = vmatpush.msra.mxu0 %v215
    %894 = vmatpush.msra.mxu0 %v211
    %895 = vmatpush.msra.mxu0 %v207
    %896 = vmatmul.f32.gmra.mxu0 %v874
    %v897 = vpop.f32.mrf.mxu0
    %v898 = vadd.f32 %v876, %v897
    %899 = vdwg.mxu0
    %900 = vmatpush.msra.mxu0 %v268
    %901 = vmatpush.msra.mxu0 %v264
    %902 = vmatpush.msra.mxu0 %v260
    %903 = vmatpush.msra.mxu0 %v256
    %904 = vmatpush.msra.mxu0 %v252
    %905 = vmatpush.msra.mxu0 %v248
    %906 = vmatpush.msra.mxu0 %v244
    %907 = vmatpush.msra.mxu0 %v240
    %908 = vmatpush.msra.mxu0 %v236
    %909 = vmatpush.msra.mxu0 %v232
    %910 = vmatpush.msra.mxu0 %v228
    %911 = vmatpush.msra.mxu0 %v224
    %912 = vmatpush.msra.mxu0 %v220
    %913 = vmatpush.msra.mxu0 %v216
    %914 = vmatpush.msra.mxu0 %v212
    %915 = vmatpush.msra.mxu0 %v208
    %916 = vmatmul.f32.gmra.mxu0 %v874
    %v917 = vpop.f32.mrf.mxu0
    %v918 = vadd.f32 %v877, %v917
    %919 = vdwg.mxu0
    %920 = vmatpush.msra.mxu0 %v269
    %921 = vmatpush.msra.mxu0 %v265
    %922 = vmatpush.msra.mxu0 %v261
    %923 = vmatpush.msra.mxu0 %v257
    %924 = vmatpush.msra.mxu0 %v253
    %925 = vmatpush.msra.mxu0 %v249
    %926 = vmatpush.msra.mxu0 %v245
    %927 = vmatpush.msra.mxu0 %v241
    %928 = vmatpush.msra.mxu0 %v237
    %929 = vmatpush.msra.mxu0 %v233
    %930 = vmatpush.msra.mxu0 %v229
    %931 = vmatpush.msra.mxu0 %v225
    %932 = vmatpush.msra.mxu0 %v221
    %933 = vmatpush.msra.mxu0 %v217
    %934 = vmatpush.msra.mxu0 %v213
    %935 = vmatpush.msra.mxu0 %v209
    %936 = vmatmul.f32.gmra.mxu0 %v874
    %v937 = vpop.f32.mrf.mxu0
    %v938 = vadd.f32 %v878, %v937
    %939 = vdwg.mxu0
    %940 = vmatpush.msra.mxu0 %v270
    %941 = vmatpush.msra.mxu0 %v266
    %942 = vmatpush.msra.mxu0 %v262
    %943 = vmatpush.msra.mxu0 %v258
    %944 = vmatpush.msra.mxu0 %v254
    %945 = vmatpush.msra.mxu0 %v250
    %946 = vmatpush.msra.mxu0 %v246
    %947 = vmatpush.msra.mxu0 %v242
    %948 = vmatpush.msra.mxu0 %v238
    %949 = vmatpush.msra.mxu0 %v234
    %950 = vmatpush.msra.mxu0 %v230
    %951 = vmatpush.msra.mxu0 %v226
    %952 = vmatpush.msra.mxu0 %v222
    %953 = vmatpush.msra.mxu0 %v218
    %954 = vmatpush.msra.mxu0 %v214
    %955 = vmatpush.msra.mxu0 %v210
    %956 = vmatmul.f32.gmra.mxu0 %v874
    %v957 = vpop.f32.mrf.mxu0
    %v958 = vadd.f32 %v879, %v957
    %959 = vdwg.mxu0
    %v960 = vxor.u32 %v898, 2147483648
    %v961 = vxor.u32 %v918, 2147483648
    %v962 = vxor.u32 %v938, 2147483648
    %v963 = vmul.f32 %v960, 1.442695
    %v964 = vpow.pop %v963
    %v965 = vmul.f32 %v961, 1.442695
    %v966 = vpow.pop %v965
    %v967 = vmul.f32 %v962, 1.442695
    %v968 = vpow.pop %v967
    %v969 = vadd.f32 %v964, 1.0
    %v970 = vadd.f32 %v966, 1.0
    %v971 = vadd.f32 %v968, 1.0
    %v972 = vrcp.pop %v969
    %v973 = vmul.f32 %v969, %v972
    %v974 = vsub.f32 1.0, %v973
    %v975 = vmul.f32 %v972, %v974
    %v976 = vadd.f32 %v972, %v975
    %vm977 = vweird.f32 %v969
    %vm978 = vweird.f32 %v972
    %vm979 = vmor %vm977, %vm978
    %v980 = vsel %vm979, %v972, %v976
    %v981 = vand.u32 2147483647, %v969
    %vm982 = vcmp.eq.f32.partialorder %v981, 8.507059e+37
    %v983 = vand.u32 %v969, 2147483648
    %v984 = vor.u32 1.1754944e-38, %v983
    %v985 = vsel %vm982, %v984, %v980
    %v986 = vmul.f32 1.0, %v985
    %v987 = vrcp.pop %v970
    %v988 = vmul.f32 %v970, %v987
    %v989 = vsub.f32 1.0, %v988
    %v990 = vmul.f32 %v987, %v989
    %v991 = vadd.f32 %v987, %v990
    %vm992 = vweird.f32 %v970
    %vm993 = vweird.f32 %v987
    %vm994 = vmor %vm992, %vm993
    %v995 = vsel %vm994, %v987, %v991
    %v996 = vand.u32 2147483647, %v970
    %vm997 = vcmp.eq.f32.partialorder %v996, 8.507059e+37
    %v998 = vand.u32 %v970, 2147483648
    %v999 = vor.u32 1.1754944e-38, %v998
    %v1000 = vsel %vm997, %v999, %v995
    %v1001 = vmul.f32 1.0, %v1000
    %v1002 = vrcp.pop %v971
    %v1003 = vmul.f32 %v971, %v1002
    %v1004 = vsub.f32 1.0, %v1003
    %v1005 = vmul.f32 %v1002, %v1004
    %v1006 = vadd.f32 %v1002, %v1005
    %vm1007 = vweird.f32 %v971
    %vm1008 = vweird.f32 %v1002
    %vm1009 = vmor %vm1007, %vm1008
    %v1010 = vsel %vm1009, %v1002, %v1006
    %v1011 = vand.u32 2147483647, %v971
    %vm1012 = vcmp.eq.f32.partialorder %v1011, 8.507059e+37
    %v1013 = vand.u32 %v971, 2147483648
    %v1014 = vor.u32 1.1754944e-38, %v1013
    %v1015 = vsel %vm1012, %v1014, %v1010
    %v1016 = vmul.f32 1.0, %v1015
    %v1017 = vtanh.pop %v958
    %v1018 = vmul.f32 %v1001, %v872
    %v1019 = vmul.f32 %v986, %v1017
    %v1020 = vadd.f32 %v1018, %v1019
    %v1021 = vtanh.pop %v1020
    %v1022 = vmul.f32 %v1016, %v1021
    %s1023 = scalar_lea.vmem [#allocation2], 160
    %v1024 = vld [vmem:[%s1023] sm:$0xff]
    %v1025 = vld [vmem:[%s1023 + $0x8] sm:$0xff]
    %v1026 = vld [vmem:[%s1023 + $0x10] sm:$0xff]
    %v1027 = vld [vmem:[%s1023 + $0x18] sm:$0xff]
    %1028 = vmatpush.msra.mxu0 %v267
    %1029 = vmatpush.msra.mxu0 %v263
    %1030 = vmatpush.msra.mxu0 %v259
    %1031 = vmatpush.msra.mxu0 %v255
    %1032 = vmatpush.msra.mxu0 %v251
    %1033 = vmatpush.msra.mxu0 %v247
    %1034 = vmatpush.msra.mxu0 %v243
    %1035 = vmatpush.msra.mxu0 %v239
    %1036 = vmatpush.msra.mxu0 %v235
    %1037 = vmatpush.msra.mxu0 %v231
    %1038 = vmatpush.msra.mxu0 %v227
    %1039 = vmatpush.msra.mxu0 %v223
    %1040 = vmatpush.msra.mxu0 %v219
    %1041 = vmatpush.msra.mxu0 %v215
    %1042 = vmatpush.msra.mxu0 %v211
    %1043 = vmatpush.msra.mxu0 %v207
    %1044 = vmatmul.f32.gmra.mxu0 %v1022
    %v1045 = vpop.f32.mrf.mxu0
    %v1046 = vadd.f32 %v1024, %v1045
    %1047 = vdwg.mxu0
    %1048 = vmatpush.msra.mxu0 %v268
    %1049 = vmatpush.msra.mxu0 %v264
    %1050 = vmatpush.msra.mxu0 %v260
    %1051 = vmatpush.msra.mxu0 %v256
    %1052 = vmatpush.msra.mxu0 %v252
    %1053 = vmatpush.msra.mxu0 %v248
    %1054 = vmatpush.msra.mxu0 %v244
    %1055 = vmatpush.msra.mxu0 %v240
    %1056 = vmatpush.msra.mxu0 %v236
    %1057 = vmatpush.msra.mxu0 %v232
    %1058 = vmatpush.msra.mxu0 %v228
    %1059 = vmatpush.msra.mxu0 %v224
    %1060 = vmatpush.msra.mxu0 %v220
    %1061 = vmatpush.msra.mxu0 %v216
    %1062 = vmatpush.msra.mxu0 %v212
    %1063 = vmatpush.msra.mxu0 %v208
    %1064 = vmatmul.f32.gmra.mxu0 %v1022
    %v1065 = vpop.f32.mrf.mxu0
    %v1066 = vadd.f32 %v1025, %v1065
    %1067 = vdwg.mxu0
    %1068 = vmatpush.msra.mxu0 %v269
    %1069 = vmatpush.msra.mxu0 %v265
    %1070 = vmatpush.msra.mxu0 %v261
    %1071 = vmatpush.msra.mxu0 %v257
    %1072 = vmatpush.msra.mxu0 %v253
    %1073 = vmatpush.msra.mxu0 %v249
    %1074 = vmatpush.msra.mxu0 %v245
    %1075 = vmatpush.msra.mxu0 %v241
    %1076 = vmatpush.msra.mxu0 %v237
    %1077 = vmatpush.msra.mxu0 %v233
    %1078 = vmatpush.msra.mxu0 %v229
    %1079 = vmatpush.msra.mxu0 %v225
    %1080 = vmatpush.msra.mxu0 %v221
    %1081 = vmatpush.msra.mxu0 %v217
    %1082 = vmatpush.msra.mxu0 %v213
    %1083 = vmatpush.msra.mxu0 %v209
    %1084 = vmatmul.f32.gmra.mxu0 %v1022
    %v1085 = vpop.f32.mrf.mxu0
    %v1086 = vadd.f32 %v1026, %v1085
    %1087 = vdwg.mxu0
    %1088 = vmatpush.msra.mxu0 %v270
    %1089 = vmatpush.msra.mxu0 %v266
    %1090 = vmatpush.msra.mxu0 %v262
    %1091 = vmatpush.msra.mxu0 %v258
    %1092 = vmatpush.msra.mxu0 %v254
    %1093 = vmatpush.msra.mxu0 %v250
    %1094 = vmatpush.msra.mxu0 %v246
    %1095 = vmatpush.msra.mxu0 %v242
    %1096 = vmatpush.msra.mxu0 %v238
    %1097 = vmatpush.msra.mxu0 %v234
    %1098 = vmatpush.msra.mxu0 %v230
    %1099 = vmatpush.msra.mxu0 %v226
    %1100 = vmatpush.msra.mxu0 %v222
    %1101 = vmatpush.msra.mxu0 %v218
    %1102 = vmatpush.msra.mxu0 %v214
    %1103 = vmatpush.msra.mxu0 %v210
    %1104 = vmatmul.f32.gmra.mxu0 %v1022
    %v1105 = vpop.f32.mrf.mxu0
    %v1106 = vadd.f32 %v1027, %v1105
    %1107 = vdwg.mxu0
    %v1108 = vxor.u32 %v1046, 2147483648
    %v1109 = vxor.u32 %v1066, 2147483648
    %v1110 = vxor.u32 %v1086, 2147483648
    %v1111 = vmul.f32 %v1108, 1.442695
    %v1112 = vpow.pop %v1111
    %v1113 = vmul.f32 %v1109, 1.442695
    %v1114 = vpow.pop %v1113
    %v1115 = vmul.f32 %v1110, 1.442695
    %v1116 = vpow.pop %v1115
    %v1117 = vadd.f32 %v1112, 1.0
    %v1118 = vadd.f32 %v1114, 1.0
    %v1119 = vadd.f32 %v1116, 1.0
    %v1120 = vrcp.pop %v1117
    %v1121 = vmul.f32 %v1117, %v1120
    %v1122 = vsub.f32 1.0, %v1121
    %v1123 = vmul.f32 %v1120, %v1122
    %v1124 = vadd.f32 %v1120, %v1123
    %vm1125 = vweird.f32 %v1117
    %vm1126 = vweird.f32 %v1120
    %vm1127 = vmor %vm1125, %vm1126
    %v1128 = vsel %vm1127, %v1120, %v1124
    %v1129 = vand.u32 2147483647, %v1117
    %vm1130 = vcmp.eq.f32.partialorder %v1129, 8.507059e+37
    %v1131 = vand.u32 %v1117, 2147483648
    %v1132 = vor.u32 1.1754944e-38, %v1131
    %v1133 = vsel %vm1130, %v1132, %v1128
    %v1134 = vmul.f32 1.0, %v1133
    %v1135 = vrcp.pop %v1118
    %v1136 = vmul.f32 %v1118, %v1135
    %v1137 = vsub.f32 1.0, %v1136
    %v1138 = vmul.f32 %v1135, %v1137
    %v1139 = vadd.f32 %v1135, %v1138
    %vm1140 = vweird.f32 %v1118
    %vm1141 = vweird.f32 %v1135
    %vm1142 = vmor %vm1140, %vm1141
    %v1143 = vsel %vm1142, %v1135, %v1139
    %v1144 = vand.u32 2147483647, %v1118
    %vm1145 = vcmp.eq.f32.partialorder %v1144, 8.507059e+37
    %v1146 = vand.u32 %v1118, 2147483648
    %v1147 = vor.u32 1.1754944e-38, %v1146
    %v1148 = vsel %vm1145, %v1147, %v1143
    %v1149 = vmul.f32 1.0, %v1148
    %v1150 = vrcp.pop %v1119
    %v1151 = vmul.f32 %v1119, %v1150
    %v1152 = vsub.f32 1.0, %v1151
    %v1153 = vmul.f32 %v1150, %v1152
    %v1154 = vadd.f32 %v1150, %v1153
    %vm1155 = vweird.f32 %v1119
    %vm1156 = vweird.f32 %v1150
    %vm1157 = vmor %vm1155, %vm1156
    %v1158 = vsel %vm1157, %v1150, %v1154
    %v1159 = vand.u32 2147483647, %v1119
    %vm1160 = vcmp.eq.f32.partialorder %v1159, 8.507059e+37
    %v1161 = vand.u32 %v1119, 2147483648
    %v1162 = vor.u32 1.1754944e-38, %v1161
    %v1163 = vsel %vm1160, %v1162, %v1158
    %v1164 = vmul.f32 1.0, %v1163
    %v1165 = vtanh.pop %v1106
    %v1166 = vmul.f32 %v1149, %v1020
    %v1167 = vmul.f32 %v1134, %v1165
    %v1168 = vadd.f32 %v1166, %v1167
    %v1169 = vtanh.pop %v1168
    %v1170 = vmul.f32 %v1164, %v1169
    %s1171 = scalar_lea.vmem [#allocation2], 192
    %v1172 = vld [vmem:[%s1171] sm:$0xff]
    %v1173 = vld [vmem:[%s1171 + $0x8] sm:$0xff]
    %v1174 = vld [vmem:[%s1171 + $0x10] sm:$0xff]
    %v1175 = vld [vmem:[%s1171 + $0x18] sm:$0xff]
    %1176 = vmatpush.msra.mxu0 %v267
    %1177 = vmatpush.msra.mxu0 %v263
    %1178 = vmatpush.msra.mxu0 %v259
    %1179 = vmatpush.msra.mxu0 %v255
    %1180 = vmatpush.msra.mxu0 %v251
    %1181 = vmatpush.msra.mxu0 %v247
    %1182 = vmatpush.msra.mxu0 %v243
    %1183 = vmatpush.msra.mxu0 %v239
    %1184 = vmatpush.msra.mxu0 %v235
    %1185 = vmatpush.msra.mxu0 %v231
    %1186 = vmatpush.msra.mxu0 %v227
    %1187 = vmatpush.msra.mxu0 %v223
    %1188 = vmatpush.msra.mxu0 %v219
    %1189 = vmatpush.msra.mxu0 %v215
    %1190 = vmatpush.msra.mxu0 %v211
    %1191 = vmatpush.msra.mxu0 %v207
    %1192 = vmatmul.f32.gmra.mxu0 %v1170
    %v1193 = vpop.f32.mrf.mxu0
    %v1194 = vadd.f32 %v1172, %v1193
    %1195 = vdwg.mxu0
    %1196 = vmatpush.msra.mxu0 %v268
    %1197 = vmatpush.msra.mxu0 %v264
    %1198 = vmatpush.msra.mxu0 %v260
    %1199 = vmatpush.msra.mxu0 %v256
    %1200 = vmatpush.msra.mxu0 %v252
    %1201 = vmatpush.msra.mxu0 %v248
    %1202 = vmatpush.msra.mxu0 %v244
    %1203 = vmatpush.msra.mxu0 %v240
    %1204 = vmatpush.msra.mxu0 %v236
    %1205 = vmatpush.msra.mxu0 %v232
    %1206 = vmatpush.msra.mxu0 %v228
    %1207 = vmatpush.msra.mxu0 %v224
    %1208 = vmatpush.msra.mxu0 %v220
    %1209 = vmatpush.msra.mxu0 %v216
    %1210 = vmatpush.msra.mxu0 %v212
    %1211 = vmatpush.msra.mxu0 %v208
    %1212 = vmatmul.f32.gmra.mxu0 %v1170
    %v1213 = vpop.f32.mrf.mxu0
    %v1214 = vadd.f32 %v1173, %v1213
    %1215 = vdwg.mxu0
    %1216 = vmatpush.msra.mxu0 %v269
    %1217 = vmatpush.msra.mxu0 %v265
    %1218 = vmatpush.msra.mxu0 %v261
    %1219 = vmatpush.msra.mxu0 %v257
    %1220 = vmatpush.msra.mxu0 %v253
    %1221 = vmatpush.msra.mxu0 %v249
    %1222 = vmatpush.msra.mxu0 %v245
    %1223 = vmatpush.msra.mxu0 %v241
    %1224 = vmatpush.msra.mxu0 %v237
    %1225 = vmatpush.msra.mxu0 %v233
    %1226 = vmatpush.msra.mxu0 %v229
    %1227 = vmatpush.msra.mxu0 %v225
    %1228 = vmatpush.msra.mxu0 %v221
    %1229 = vmatpush.msra.mxu0 %v217
    %1230 = vmatpush.msra.mxu0 %v213
    %1231 = vmatpush.msra.mxu0 %v209
    %1232 = vmatmul.f32.gmra.mxu0 %v1170
    %v1233 = vpop.f32.mrf.mxu0
    %v1234 = vadd.f32 %v1174, %v1233
    %1235 = vdwg.mxu0
    %1236 = vmatpush.msra.mxu0 %v270
    %1237 = vmatpush.msra.mxu0 %v266
    %1238 = vmatpush.msra.mxu0 %v262
    %1239 = vmatpush.msra.mxu0 %v258
    %1240 = vmatpush.msra.mxu0 %v254
    %1241 = vmatpush.msra.mxu0 %v250
    %1242 = vmatpush.msra.mxu0 %v246
    %1243 = vmatpush.msra.mxu0 %v242
    %1244 = vmatpush.msra.mxu0 %v238
    %1245 = vmatpush.msra.mxu0 %v234
    %1246 = vmatpush.msra.mxu0 %v230
    %1247 = vmatpush.msra.mxu0 %v226
    %1248 = vmatpush.msra.mxu0 %v222
    %1249 = vmatpush.msra.mxu0 %v218
    %1250 = vmatpush.msra.mxu0 %v214
    %1251 = vmatpush.msra.mxu0 %v210
    %1252 = vmatmul.f32.gmra.mxu0 %v1170
    %v1253 = vpop.f32.mrf.mxu0
    %v1254 = vadd.f32 %v1175, %v1253
    %1255 = vdwg.mxu0
    %v1256 = vxor.u32 %v1194, 2147483648
    %v1257 = vxor.u32 %v1214, 2147483648
    %v1258 = vxor.u32 %v1234, 2147483648
    %v1259 = vmul.f32 %v1256, 1.442695
    %v1260 = vpow.pop %v1259
    %v1261 = vmul.f32 %v1257, 1.442695
    %v1262 = vpow.pop %v1261
    %v1263 = vmul.f32 %v1258, 1.442695
    %v1264 = vpow.pop %v1263
    %v1265 = vadd.f32 %v1260, 1.0
    %v1266 = vadd.f32 %v1262, 1.0
    %v1267 = vadd.f32 %v1264, 1.0
    %v1268 = vrcp.pop %v1265
    %v1269 = vmul.f32 %v1265, %v1268
    %v1270 = vsub.f32 1.0, %v1269
    %v1271 = vmul.f32 %v1268, %v1270
    %v1272 = vadd.f32 %v1268, %v1271
    %vm1273 = vweird.f32 %v1265
    %vm1274 = vweird.f32 %v1268
    %vm1275 = vmor %vm1273, %vm1274
    %v1276 = vsel %vm1275, %v1268, %v1272
    %v1277 = vand.u32 2147483647, %v1265
    %vm1278 = vcmp.eq.f32.partialorder %v1277, 8.507059e+37
    %v1279 = vand.u32 %v1265, 2147483648
    %v1280 = vor.u32 1.1754944e-38, %v1279
    %v1281 = vsel %vm1278, %v1280, %v1276
    %v1282 = vmul.f32 1.0, %v1281
    %v1283 = vrcp.pop %v1266
    %v1284 = vmul.f32 %v1266, %v1283
    %v1285 = vsub.f32 1.0, %v1284
    %v1286 = vmul.f32 %v1283, %v1285
    %v1287 = vadd.f32 %v1283, %v1286
    %vm1288 = vweird.f32 %v1266
    %vm1289 = vweird.f32 %v1283
    %vm1290 = vmor %vm1288, %vm1289
    %v1291 = vsel %vm1290, %v1283, %v1287
    %v1292 = vand.u32 2147483647, %v1266
    %vm1293 = vcmp.eq.f32.partialorder %v1292, 8.507059e+37
    %v1294 = vand.u32 %v1266, 2147483648
    %v1295 = vor.u32 1.1754944e-38, %v1294
    %v1296 = vsel %vm1293, %v1295, %v1291
    %v1297 = vmul.f32 1.0, %v1296
    %v1298 = vrcp.pop %v1267
    %v1299 = vmul.f32 %v1267, %v1298
    %v1300 = vsub.f32 1.0, %v1299
    %v1301 = vmul.f32 %v1298, %v1300
    %v1302 = vadd.f32 %v1298, %v1301
    %vm1303 = vweird.f32 %v1267
    %vm1304 = vweird.f32 %v1298
    %vm1305 = vmor %vm1303, %vm1304
    %v1306 = vsel %vm1305, %v1298, %v1302
    %v1307 = vand.u32 2147483647, %v1267
    %vm1308 = vcmp.eq.f32.partialorder %v1307, 8.507059e+37
    %v1309 = vand.u32 %v1267, 2147483648
    %v1310 = vor.u32 1.1754944e-38, %v1309
    %v1311 = vsel %vm1308, %v1310, %v1306
    %v1312 = vmul.f32 1.0, %v1311
    %v1313 = vtanh.pop %v1254
    %v1314 = vmul.f32 %v1297, %v1168
    %v1315 = vmul.f32 %v1282, %v1313
    %v1316 = vadd.f32 %v1314, %v1315
    %v1317 = vtanh.pop %v1316
    %v1318 = vmul.f32 %v1312, %v1317
    %s1319 = scalar_lea.vmem [#allocation2], 224
    %v1320 = vld [vmem:[%s1319] sm:$0xff]
    %v1321 = vld [vmem:[%s1319 + $0x8] sm:$0xff]
    %v1322 = vld [vmem:[%s1319 + $0x10] sm:$0xff]
    %v1323 = vld [vmem:[%s1319 + $0x18] sm:$0xff]
    %1324 = vmatpush.msra.mxu0 %v267
    %1325 = vmatpush.msra.mxu0 %v263
    %1326 = vmatpush.msra.mxu0 %v259
    %1327 = vmatpush.msra.mxu0 %v255
    %1328 = vmatpush.msra.mxu0 %v251
    %1329 = vmatpush.msra.mxu0 %v247
    %1330 = vmatpush.msra.mxu0 %v243
    %1331 = vmatpush.msra.mxu0 %v239
    %1332 = vmatpush.msra.mxu0 %v235
    %1333 = vmatpush.msra.mxu0 %v231
    %1334 = vmatpush.msra.mxu0 %v227
    %1335 = vmatpush.msra.mxu0 %v223
    %1336 = vmatpush.msra.mxu0 %v219
    %1337 = vmatpush.msra.mxu0 %v215
    %1338 = vmatpush.msra.mxu0 %v211
    %1339 = vmatpush.msra.mxu0 %v207
    %1340 = vmatmul.f32.gmra.mxu0 %v1318
    %v1341 = vpop.f32.mrf.mxu0
    %v1342 = vadd.f32 %v1320, %v1341
    %1343 = vdwg.mxu0
    %1344 = vmatpush.msra.mxu0 %v268
    %1345 = vmatpush.msra.mxu0 %v264
    %1346 = vmatpush.msra.mxu0 %v260
    %1347 = vmatpush.msra.mxu0 %v256
    %1348 = vmatpush.msra.mxu0 %v252
    %1349 = vmatpush.msra.mxu0 %v248
    %1350 = vmatpush.msra.mxu0 %v244
    %1351 = vmatpush.msra.mxu0 %v240
    %1352 = vmatpush.msra.mxu0 %v236
    %1353 = vmatpush.msra.mxu0 %v232
    %1354 = vmatpush.msra.mxu0 %v228
    %1355 = vmatpush.msra.mxu0 %v224
    %1356 = vmatpush.msra.mxu0 %v220
    %1357 = vmatpush.msra.mxu0 %v216
    %1358 = vmatpush.msra.mxu0 %v212
    %1359 = vmatpush.msra.mxu0 %v208
    %1360 = vmatmul.f32.gmra.mxu0 %v1318
    %v1361 = vpop.f32.mrf.mxu0
    %v1362 = vadd.f32 %v1321, %v1361
    %1363 = vdwg.mxu0
    %1364 = vmatpush.msra.mxu0 %v269
    %1365 = vmatpush.msra.mxu0 %v265
    %1366 = vmatpush.msra.mxu0 %v261
    %1367 = vmatpush.msra.mxu0 %v257
    %1368 = vmatpush.msra.mxu0 %v253
    %1369 = vmatpush.msra.mxu0 %v249
    %1370 = vmatpush.msra.mxu0 %v245
    %1371 = vmatpush.msra.mxu0 %v241
    %1372 = vmatpush.msra.mxu0 %v237
    %1373 = vmatpush.msra.mxu0 %v233
    %1374 = vmatpush.msra.mxu0 %v229
    %1375 = vmatpush.msra.mxu0 %v225
    %1376 = vmatpush.msra.mxu0 %v221
    %1377 = vmatpush.msra.mxu0 %v217
    %1378 = vmatpush.msra.mxu0 %v213
    %1379 = vmatpush.msra.mxu0 %v209
    %1380 = vmatmul.f32.gmra.mxu0 %v1318
    %v1381 = vpop.f32.mrf.mxu0
    %v1382 = vadd.f32 %v1322, %v1381
    %1383 = vdwg.mxu0
    %1384 = vmatpush.msra.mxu0 %v270
    %1385 = vmatpush.msra.mxu0 %v266
    %1386 = vmatpush.msra.mxu0 %v262
    %1387 = vmatpush.msra.mxu0 %v258
    %1388 = vmatpush.msra.mxu0 %v254
    %1389 = vmatpush.msra.mxu0 %v250
    %1390 = vmatpush.msra.mxu0 %v246
    %1391 = vmatpush.msra.mxu0 %v242
    %1392 = vmatpush.msra.mxu0 %v238
    %1393 = vmatpush.msra.mxu0 %v234
    %1394 = vmatpush.msra.mxu0 %v230
    %1395 = vmatpush.msra.mxu0 %v226
    %1396 = vmatpush.msra.mxu0 %v222
    %1397 = vmatpush.msra.mxu0 %v218
    %1398 = vmatpush.msra.mxu0 %v214
    %1399 = vmatpush.msra.mxu0 %v210
    %1400 = vmatmul.f32.gmra.mxu0 %v1318
    %v1401 = vpop.f32.mrf.mxu0
    %v1402 = vadd.f32 %v1323, %v1401
    %1403 = vdwg.mxu0
    %v1404 = vxor.u32 %v1342, 2147483648
    %v1405 = vxor.u32 %v1362, 2147483648
    %v1406 = vxor.u32 %v1382, 2147483648
    %v1407 = vmul.f32 %v1404, 1.442695
    %v1408 = vpow.pop %v1407
    %v1409 = vmul.f32 %v1405, 1.442695
    %v1410 = vpow.pop %v1409
    %v1411 = vmul.f32 %v1406, 1.442695
    %v1412 = vpow.pop %v1411
    %v1413 = vadd.f32 %v1408, 1.0
    %v1414 = vadd.f32 %v1410, 1.0
    %v1415 = vadd.f32 %v1412, 1.0
    %v1416 = vrcp.pop %v1413
    %v1417 = vmul.f32 %v1413, %v1416
    %v1418 = vsub.f32 1.0, %v1417
    %v1419 = vmul.f32 %v1416, %v1418
    %v1420 = vadd.f32 %v1416, %v1419
    %vm1421 = vweird.f32 %v1413
    %vm1422 = vweird.f32 %v1416
    %vm1423 = vmor %vm1421, %vm1422
    %v1424 = vsel %vm1423, %v1416, %v1420
    %v1425 = vand.u32 2147483647, %v1413
    %vm1426 = vcmp.eq.f32.partialorder %v1425, 8.507059e+37
    %v1427 = vand.u32 %v1413, 2147483648
    %v1428 = vor.u32 1.1754944e-38, %v1427
    %v1429 = vsel %vm1426, %v1428, %v1424
    %v1430 = vmul.f32 1.0, %v1429
    %v1431 = vrcp.pop %v1414
    %v1432 = vmul.f32 %v1414, %v1431
    %v1433 = vsub.f32 1.0, %v1432
    %v1434 = vmul.f32 %v1431, %v1433
    %v1435 = vadd.f32 %v1431, %v1434
    %vm1436 = vweird.f32 %v1414
    %vm1437 = vweird.f32 %v1431
    %vm1438 = vmor %vm1436, %vm1437
    %v1439 = vsel %vm1438, %v1431, %v1435
    %v1440 = vand.u32 2147483647, %v1414
    %vm1441 = vcmp.eq.f32.partialorder %v1440, 8.507059e+37
    %v1442 = vand.u32 %v1414, 2147483648
    %v1443 = vor.u32 1.1754944e-38, %v1442
    %v1444 = vsel %vm1441, %v1443, %v1439
    %v1445 = vmul.f32 1.0, %v1444
    %v1446 = vrcp.pop %v1415
    %v1447 = vmul.f32 %v1415, %v1446
    %v1448 = vsub.f32 1.0, %v1447
    %v1449 = vmul.f32 %v1446, %v1448
    %v1450 = vadd.f32 %v1446, %v1449
    %vm1451 = vweird.f32 %v1415
    %vm1452 = vweird.f32 %v1446
    %vm1453 = vmor %vm1451, %vm1452
    %v1454 = vsel %vm1453, %v1446, %v1450
    %v1455 = vand.u32 2147483647, %v1415
    %vm1456 = vcmp.eq.f32.partialorder %v1455, 8.507059e+37
    %v1457 = vand.u32 %v1415, 2147483648
    %v1458 = vor.u32 1.1754944e-38, %v1457
    %v1459 = vsel %vm1456, %v1458, %v1454
    %v1460 = vmul.f32 1.0, %v1459
    %v1461 = vtanh.pop %v1402
    %v1462 = vmul.f32 %v1445, %v1316
    %v1463 = vmul.f32 %v1430, %v1461
    %v1464 = vadd.f32 %v1462, %v1463
    %v1465 = vtanh.pop %v1464
    %v1466 = vmul.f32 %v1460, %v1465
    %1467 = vmatpush.msra.mxu0 %v267
    %1468 = vmatpush.msra.mxu0 %v263
    %1469 = vmatpush.msra.mxu0 %v259
    %1470 = vmatpush.msra.mxu0 %v255
    %1471 = vmatpush.msra.mxu0 %v251
    %1472 = vmatpush.msra.mxu0 %v247
    %1473 = vmatpush.msra.mxu0 %v243
    %1474 = vmatpush.msra.mxu0 %v239
    %1475 = vmatpush.msra.mxu0 %v235
    %1476 = vmatpush.msra.mxu0 %v231
    %1477 = vmatpush.msra.mxu0 %v227
    %1478 = vmatpush.msra.mxu0 %v223
    %1479 = vmatpush.msra.mxu0 %v219
    %1480 = vmatpush.msra.mxu0 %v215
    %1481 = vmatpush.msra.mxu0 %v211
    %1482 = vmatpush.msra.mxu0 %v207
    %1483 = vmatmul.f32.gmra.mxu0 %v1466
    %v1484 = vpop.f32.mrf.mxu0
    %v1485 = vadd.f32 %v1320, %v1484
    %1486 = vdwg.mxu0
    %1487 = vmatpush.msra.mxu0 %v268
    %1488 = vmatpush.msra.mxu0 %v264
    %1489 = vmatpush.msra.mxu0 %v260
    %1490 = vmatpush.msra.mxu0 %v256
    %1491 = vmatpush.msra.mxu0 %v252
    %1492 = vmatpush.msra.mxu0 %v248
    %1493 = vmatpush.msra.mxu0 %v244
    %1494 = vmatpush.msra.mxu0 %v240
    %1495 = vmatpush.msra.mxu0 %v236
    %1496 = vmatpush.msra.mxu0 %v232
    %1497 = vmatpush.msra.mxu0 %v228
    %1498 = vmatpush.msra.mxu0 %v224
    %1499 = vmatpush.msra.mxu0 %v220
    %1500 = vmatpush.msra.mxu0 %v216
    %1501 = vmatpush.msra.mxu0 %v212
    %1502 = vmatpush.msra.mxu0 %v208
    %1503 = vmatmul.f32.gmra.mxu0 %v1466
    %v1504 = vpop.f32.mrf.mxu0
    %v1505 = vadd.f32 %v1321, %v1504
    %1506 = vdwg.mxu0
    %1507 = vmatpush.msra.mxu0 %v269
    %1508 = vmatpush.msra.mxu0 %v265
    %1509 = vmatpush.msra.mxu0 %v261
    %1510 = vmatpush.msra.mxu0 %v257
    %1511 = vmatpush.msra.mxu0 %v253
    %1512 = vmatpush.msra.mxu0 %v249
    %1513 = vmatpush.msra.mxu0 %v245
    %1514 = vmatpush.msra.mxu0 %v241
    %1515 = vmatpush.msra.mxu0 %v237
    %1516 = vmatpush.msra.mxu0 %v233
    %1517 = vmatpush.msra.mxu0 %v229
    %1518 = vmatpush.msra.mxu0 %v225
    %1519 = vmatpush.msra.mxu0 %v221
    %1520 = vmatpush.msra.mxu0 %v217
    %1521 = vmatpush.msra.mxu0 %v213
    %1522 = vmatpush.msra.mxu0 %v209
    %1523 = vmatmul.f32.gmra.mxu0 %v1466
    %v1524 = vpop.f32.mrf.mxu0
    %v1525 = vadd.f32 %v1322, %v1524
    %1526 = vdwg.mxu0
    %1527 = vmatpush.msra.mxu0 %v270
    %1528 = vmatpush.msra.mxu0 %v266
    %1529 = vmatpush.msra.mxu0 %v262
    %1530 = vmatpush.msra.mxu0 %v258
    %1531 = vmatpush.msra.mxu0 %v254
    %1532 = vmatpush.msra.mxu0 %v250
    %1533 = vmatpush.msra.mxu0 %v246
    %1534 = vmatpush.msra.mxu0 %v242
    %1535 = vmatpush.msra.mxu0 %v238
    %1536 = vmatpush.msra.mxu0 %v234
    %1537 = vmatpush.msra.mxu0 %v230
    %1538 = vmatpush.msra.mxu0 %v226
    %1539 = vmatpush.msra.mxu0 %v222
    %1540 = vmatpush.msra.mxu0 %v218
    %1541 = vmatpush.msra.mxu0 %v214
    %1542 = vmatpush.msra.mxu0 %v210
    %1543 = vmatmul.f32.gmra.mxu0 %v1466
    %v1544 = vpop.f32.mrf.mxu0
    %v1545 = vadd.f32 %v1323, %v1544
    %1546 = vdwg.mxu0
    %v1547 = vxor.u32 %v1485, 2147483648
    %v1548 = vxor.u32 %v1505, 2147483648
    %v1549 = vxor.u32 %v1525, 2147483648
    %v1550 = vmul.f32 %v1547, 1.442695
    %v1551 = vpow.pop %v1550
    %v1552 = vmul.f32 %v1548, 1.442695
    %v1553 = vpow.pop %v1552
    %v1554 = vmul.f32 %v1549, 1.442695
    %v1555 = vpow.pop %v1554
    %v1556 = vadd.f32 %v1551, 1.0
    %v1557 = vadd.f32 %v1553, 1.0
    %v1558 = vadd.f32 %v1555, 1.0
    %v1559 = vrcp.pop %v1556
    %v1560 = vmul.f32 %v1556, %v1559
    %v1561 = vsub.f32 1.0, %v1560
    %v1562 = vmul.f32 %v1559, %v1561
    %v1563 = vadd.f32 %v1559, %v1562
    %vm1564 = vweird.f32 %v1556
    %vm1565 = vweird.f32 %v1559
    %vm1566 = vmor %vm1564, %vm1565
    %v1567 = vsel %vm1566, %v1559, %v1563
    %v1568 = vand.u32 2147483647, %v1556
    %vm1569 = vcmp.eq.f32.partialorder %v1568, 8.507059e+37
    %v1570 = vand.u32 %v1556, 2147483648
    %v1571 = vor.u32 1.1754944e-38, %v1570
    %v1572 = vsel %vm1569, %v1571, %v1567
    %v1573 = vmul.f32 1.0, %v1572
    %v1574 = vrcp.pop %v1557
    %v1575 = vmul.f32 %v1557, %v1574
    %v1576 = vsub.f32 1.0, %v1575
    %v1577 = vmul.f32 %v1574, %v1576
    %v1578 = vadd.f32 %v1574, %v1577
    %vm1579 = vweird.f32 %v1557
    %vm1580 = vweird.f32 %v1574
    %vm1581 = vmor %vm1579, %vm1580
    %v1582 = vsel %vm1581, %v1574, %v1578
    %v1583 = vand.u32 2147483647, %v1557
    %vm1584 = vcmp.eq.f32.partialorder %v1583, 8.507059e+37
    %v1585 = vand.u32 %v1557, 2147483648
    %v1586 = vor.u32 1.1754944e-38, %v1585
    %v1587 = vsel %vm1584, %v1586, %v1582
    %v1588 = vmul.f32 1.0, %v1587
    %v1589 = vrcp.pop %v1558
    %v1590 = vmul.f32 %v1558, %v1589
    %v1591 = vsub.f32 1.0, %v1590
    %v1592 = vmul.f32 %v1589, %v1591
    %v1593 = vadd.f32 %v1589, %v1592
    %vm1594 = vweird.f32 %v1558
    %vm1595 = vweird.f32 %v1589
    %vm1596 = vmor %vm1594, %vm1595
    %v1597 = vsel %vm1596, %v1589, %v1593
    %v1598 = vand.u32 2147483647, %v1558
    %vm1599 = vcmp.eq.f32.partialorder %v1598, 8.507059e+37
    %v1600 = vand.u32 %v1558, 2147483648
    %v1601 = vor.u32 1.1754944e-38, %v1600
    %v1602 = vsel %vm1599, %v1601, %v1597
    %v1603 = vmul.f32 1.0, %v1602
    %v1604 = vtanh.pop %v1545
    %v1605 = vmul.f32 %v1588, %v1464
    %v1606 = vmul.f32 %v1573, %v1604
    %v1607 = vadd.f32 %v1605, %v1606
    %v1608 = vtanh.pop %v1607
    %v1609 = vmul.f32 %v1603, %v1608
    %vm1610 = vcmp.ge.s32.totalorder %v206, 32
    %vm1611 = vcmp.lt.s32.totalorder %v206, 128
    %vm1612 = vmand %vm1610, %vm1611
    %v1613 = vsel %vm1612, %v1609, %v1466
    %v1614 = vsel %vm1612, %v1607, %v1464
    %1615 = vmatpush.msra.mxu0 %v267
    %1616 = vmatpush.msra.mxu0 %v263
    %1617 = vmatpush.msra.mxu0 %v259
    %1618 = vmatpush.msra.mxu0 %v255
    %1619 = vmatpush.msra.mxu0 %v251
    %1620 = vmatpush.msra.mxu0 %v247
    %1621 = vmatpush.msra.mxu0 %v243
    %1622 = vmatpush.msra.mxu0 %v239
    %1623 = vmatpush.msra.mxu0 %v235
    %1624 = vmatpush.msra.mxu0 %v231
    %1625 = vmatpush.msra.mxu0 %v227
    %1626 = vmatpush.msra.mxu0 %v223
    %1627 = vmatpush.msra.mxu0 %v219
    %1628 = vmatpush.msra.mxu0 %v215
    %1629 = vmatpush.msra.mxu0 %v211
    %1630 = vmatpush.msra.mxu0 %v207
    %1631 = vmatmul.f32.gmra.mxu0 %v1613
    %v1632 = vpop.f32.mrf.mxu0
    %v1633 = vadd.f32 %v1320, %v1632
    %1634 = vdwg.mxu0
    %1635 = vmatpush.msra.mxu0 %v268
    %1636 = vmatpush.msra.mxu0 %v264
    %1637 = vmatpush.msra.mxu0 %v260
    %1638 = vmatpush.msra.mxu0 %v256
    %1639 = vmatpush.msra.mxu0 %v252
    %1640 = vmatpush.msra.mxu0 %v248
    %1641 = vmatpush.msra.mxu0 %v244
    %1642 = vmatpush.msra.mxu0 %v240
    %1643 = vmatpush.msra.mxu0 %v236
    %1644 = vmatpush.msra.mxu0 %v232
    %1645 = vmatpush.msra.mxu0 %v228
    %1646 = vmatpush.msra.mxu0 %v224
    %1647 = vmatpush.msra.mxu0 %v220
    %1648 = vmatpush.msra.mxu0 %v216
    %1649 = vmatpush.msra.mxu0 %v212
    %1650 = vmatpush.msra.mxu0 %v208
    %1651 = vmatmul.f32.gmra.mxu0 %v1613
    %v1652 = vpop.f32.mrf.mxu0
    %v1653 = vadd.f32 %v1321, %v1652
    %1654 = vdwg.mxu0
    %1655 = vmatpush.msra.mxu0 %v269
    %1656 = vmatpush.msra.mxu0 %v265
    %1657 = vmatpush.msra.mxu0 %v261
    %1658 = vmatpush.msra.mxu0 %v257
    %1659 = vmatpush.msra.mxu0 %v253
    %1660 = vmatpush.msra.mxu0 %v249
    %1661 = vmatpush.msra.mxu0 %v245
    %1662 = vmatpush.msra.mxu0 %v241
    %1663 = vmatpush.msra.mxu0 %v237
    %1664 = vmatpush.msra.mxu0 %v233
    %1665 = vmatpush.msra.mxu0 %v229
    %1666 = vmatpush.msra.mxu0 %v225
    %1667 = vmatpush.msra.mxu0 %v221
    %1668 = vmatpush.msra.mxu0 %v217
    %1669 = vmatpush.msra.mxu0 %v213
    %1670 = vmatpush.msra.mxu0 %v209
    %1671 = vmatmul.f32.gmra.mxu0 %v1613
    %v1672 = vpop.f32.mrf.mxu0
    %v1673 = vadd.f32 %v1322, %v1672
    %1674 = vdwg.mxu0
    %1675 = vmatpush.msra.mxu0 %v270
    %1676 = vmatpush.msra.mxu0 %v266
    %1677 = vmatpush.msra.mxu0 %v262
    %1678 = vmatpush.msra.mxu0 %v258
    %1679 = vmatpush.msra.mxu0 %v254
    %1680 = vmatpush.msra.mxu0 %v250
    %1681 = vmatpush.msra.mxu0 %v246
    %1682 = vmatpush.msra.mxu0 %v242
    %1683 = vmatpush.msra.mxu0 %v238
    %1684 = vmatpush.msra.mxu0 %v234
    %1685 = vmatpush.msra.mxu0 %v230
    %1686 = vmatpush.msra.mxu0 %v226
    %1687 = vmatpush.msra.mxu0 %v222
    %1688 = vmatpush.msra.mxu0 %v218
    %1689 = vmatpush.msra.mxu0 %v214
    %1690 = vmatpush.msra.mxu0 %v210
    %1691 = vmatmul.f32.gmra.mxu0 %v1613
    %v1692 = vpop.f32.mrf.mxu0
    %v1693 = vadd.f32 %v1323, %v1692
    %1694 = vdwg.mxu0
    %v1695 = vxor.u32 %v1633, 2147483648
    %v1696 = vxor.u32 %v1653, 2147483648
    %v1697 = vxor.u32 %v1673, 2147483648
    %v1698 = vmul.f32 %v1695, 1.442695
    %v1699 = vpow.pop %v1698
    %v1700 = vmul.f32 %v1696, 1.442695
    %v1701 = vpow.pop %v1700
    %v1702 = vmul.f32 %v1697, 1.442695
    %v1703 = vpow.pop %v1702
    %v1704 = vadd.f32 %v1699, 1.0
    %v1705 = vadd.f32 %v1701, 1.0
    %v1706 = vadd.f32 %v1703, 1.0
    %v1707 = vrcp.pop %v1704
    %v1708 = vmul.f32 %v1704, %v1707
    %v1709 = vsub.f32 1.0, %v1708
    %v1710 = vmul.f32 %v1707, %v1709
    %v1711 = vadd.f32 %v1707, %v1710
    %vm1712 = vweird.f32 %v1704
    %vm1713 = vweird.f32 %v1707
    %vm1714 = vmor %vm1712, %vm1713
    %v1715 = vsel %vm1714, %v1707, %v1711
    %v1716 = vand.u32 2147483647, %v1704
    %vm1717 = vcmp.eq.f32.partialorder %v1716, 8.507059e+37
    %v1718 = vand.u32 %v1704, 2147483648
    %v1719 = vor.u32 1.1754944e-38, %v1718
    %v1720 = vsel %vm1717, %v1719, %v1715
    %v1721 = vmul.f32 1.0, %v1720
    %v1722 = vrcp.pop %v1705
    %v1723 = vmul.f32 %v1705, %v1722
    %v1724 = vsub.f32 1.0, %v1723
    %v1725 = vmul.f32 %v1722, %v1724
    %v1726 = vadd.f32 %v1722, %v1725
    %vm1727 = vweird.f32 %v1705
    %vm1728 = vweird.f32 %v1722
    %vm1729 = vmor %vm1727, %vm1728
    %v1730 = vsel %vm1729, %v1722, %v1726
    %v1731 = vand.u32 2147483647, %v1705
    %vm1732 = vcmp.eq.f32.partialorder %v1731, 8.507059e+37
    %v1733 = vand.u32 %v1705, 2147483648
    %v1734 = vor.u32 1.1754944e-38, %v1733
    %v1735 = vsel %vm1732, %v1734, %v1730
    %v1736 = vmul.f32 1.0, %v1735
    %v1737 = vrcp.pop %v1706
    %v1738 = vmul.f32 %v1706, %v1737
    %v1739 = vsub.f32 1.0, %v1738
    %v1740 = vmul.f32 %v1737, %v1739
    %v1741 = vadd.f32 %v1737, %v1740
    %vm1742 = vweird.f32 %v1706
    %vm1743 = vweird.f32 %v1737
    %vm1744 = vmor %vm1742, %vm1743
    %v1745 = vsel %vm1744, %v1737, %v1741
    %v1746 = vand.u32 2147483647, %v1706
    %vm1747 = vcmp.eq.f32.partialorder %v1746, 8.507059e+37
    %v1748 = vand.u32 %v1706, 2147483648
    %v1749 = vor.u32 1.1754944e-38, %v1748
    %v1750 = vsel %vm1747, %v1749, %v1745
    %v1751 = vmul.f32 1.0, %v1750
    %v1752 = vtanh.pop %v1693
    %v1753 = vmul.f32 %v1736, %v1614
    %v1754 = vmul.f32 %v1721, %v1752
    %v1755 = vadd.f32 %v1753, %v1754
    %v1756 = vtanh.pop %v1755
    %v1757 = vmul.f32 %v1751, %v1756
    %vm1758 = vcmp.ge.s32.totalorder %v206, 64
    %vm1759 = vmand %vm1758, %vm1611
    %v1760 = vsel %vm1759, %v1757, %v1613
    %v1761 = vsel %vm1759, %v1755, %v1614
    %1762 = vmatpush.msra.mxu0 %v267
    %1763 = vmatpush.msra.mxu0 %v263
    %1764 = vmatpush.msra.mxu0 %v259
    %1765 = vmatpush.msra.mxu0 %v255
    %1766 = vmatpush.msra.mxu0 %v251
    %1767 = vmatpush.msra.mxu0 %v247
    %1768 = vmatpush.msra.mxu0 %v243
    %1769 = vmatpush.msra.mxu0 %v239
    %1770 = vmatpush.msra.mxu0 %v235
    %1771 = vmatpush.msra.mxu0 %v231
    %1772 = vmatpush.msra.mxu0 %v227
    %1773 = vmatpush.msra.mxu0 %v223
    %1774 = vmatpush.msra.mxu0 %v219
    %1775 = vmatpush.msra.mxu0 %v215
    %1776 = vmatpush.msra.mxu0 %v211
    %1777 = vmatpush.msra.mxu0 %v207
    %1778 = vmatmul.f32.gmra.mxu0 %v1760
    %v1779 = vpop.f32.mrf.mxu0
    %v1780 = vadd.f32 %v1320, %v1779
    %1781 = vdwg.mxu0
    %1782 = vmatpush.msra.mxu0 %v268
    %1783 = vmatpush.msra.mxu0 %v264
    %1784 = vmatpush.msra.mxu0 %v260
    %1785 = vmatpush.msra.mxu0 %v256
    %1786 = vmatpush.msra.mxu0 %v252
    %1787 = vmatpush.msra.mxu0 %v248
    %1788 = vmatpush.msra.mxu0 %v244
    %1789 = vmatpush.msra.mxu0 %v240
    %1790 = vmatpush.msra.mxu0 %v236
    %1791 = vmatpush.msra.mxu0 %v232
    %1792 = vmatpush.msra.mxu0 %v228
    %1793 = vmatpush.msra.mxu0 %v224
    %1794 = vmatpush.msra.mxu0 %v220
    %1795 = vmatpush.msra.mxu0 %v216
    %1796 = vmatpush.msra.mxu0 %v212
    %1797 = vmatpush.msra.mxu0 %v208
    %1798 = vmatmul.f32.gmra.mxu0 %v1760
    %v1799 = vpop.f32.mrf.mxu0
    %v1800 = vadd.f32 %v1321, %v1799
    %1801 = vdwg.mxu0
    %1802 = vmatpush.msra.mxu0 %v269
    %1803 = vmatpush.msra.mxu0 %v265
    %1804 = vmatpush.msra.mxu0 %v261
    %1805 = vmatpush.msra.mxu0 %v257
    %1806 = vmatpush.msra.mxu0 %v253
    %1807 = vmatpush.msra.mxu0 %v249
    %1808 = vmatpush.msra.mxu0 %v245
    %1809 = vmatpush.msra.mxu0 %v241
    %1810 = vmatpush.msra.mxu0 %v237
    %1811 = vmatpush.msra.mxu0 %v233
    %1812 = vmatpush.msra.mxu0 %v229
    %1813 = vmatpush.msra.mxu0 %v225
    %1814 = vmatpush.msra.mxu0 %v221
    %1815 = vmatpush.msra.mxu0 %v217
    %1816 = vmatpush.msra.mxu0 %v213
    %1817 = vmatpush.msra.mxu0 %v209
    %1818 = vmatmul.f32.gmra.mxu0 %v1760
    %v1819 = vpop.f32.mrf.mxu0
    %v1820 = vadd.f32 %v1322, %v1819
    %1821 = vdwg.mxu0
    %1822 = vmatpush.msra.mxu0 %v270
    %1823 = vmatpush.msra.mxu0 %v266
    %1824 = vmatpush.msra.mxu0 %v262
    %1825 = vmatpush.msra.mxu0 %v258
    %1826 = vmatpush.msra.mxu0 %v254
    %1827 = vmatpush.msra.mxu0 %v250
    %1828 = vmatpush.msra.mxu0 %v246
    %1829 = vmatpush.msra.mxu0 %v242
    %1830 = vmatpush.msra.mxu0 %v238
    %1831 = vmatpush.msra.mxu0 %v234
    %1832 = vmatpush.msra.mxu0 %v230
    %1833 = vmatpush.msra.mxu0 %v226
    %1834 = vmatpush.msra.mxu0 %v222
    %1835 = vmatpush.msra.mxu0 %v218
    %1836 = vmatpush.msra.mxu0 %v214
    %1837 = vmatpush.msra.mxu0 %v210
    %1838 = vmatmul.f32.gmra.mxu0 %v1760
    %v1839 = vpop.f32.mrf.mxu0
    %v1840 = vadd.f32 %v1323, %v1839
    %1841 = vdwg.mxu0
    %v1842 = vxor.u32 %v1780, 2147483648
    %v1843 = vxor.u32 %v1800, 2147483648
    %v1844 = vxor.u32 %v1820, 2147483648
    %v1845 = vmul.f32 %v1842, 1.442695
    %v1846 = vpow.pop %v1845
    %v1847 = vmul.f32 %v1843, 1.442695
    %v1848 = vpow.pop %v1847
    %v1849 = vmul.f32 %v1844, 1.442695
    %v1850 = vpow.pop %v1849
    %v1851 = vadd.f32 %v1846, 1.0
    %v1852 = vadd.f32 %v1848, 1.0
    %v1853 = vadd.f32 %v1850, 1.0
    %v1854 = vrcp.pop %v1851
    %v1855 = vmul.f32 %v1851, %v1854
    %v1856 = vsub.f32 1.0, %v1855
    %v1857 = vmul.f32 %v1854, %v1856
    %v1858 = vadd.f32 %v1854, %v1857
    %vm1859 = vweird.f32 %v1851
    %vm1860 = vweird.f32 %v1854
    %vm1861 = vmor %vm1859, %vm1860
    %v1862 = vsel %vm1861, %v1854, %v1858
    %v1863 = vand.u32 2147483647, %v1851
    %vm1864 = vcmp.eq.f32.partialorder %v1863, 8.507059e+37
    %v1865 = vand.u32 %v1851, 2147483648
    %v1866 = vor.u32 1.1754944e-38, %v1865
    %v1867 = vsel %vm1864, %v1866, %v1862
    %v1868 = vmul.f32 1.0, %v1867
    %v1869 = vrcp.pop %v1852
    %v1870 = vmul.f32 %v1852, %v1869
    %v1871 = vsub.f32 1.0, %v1870
    %v1872 = vmul.f32 %v1869, %v1871
    %v1873 = vadd.f32 %v1869, %v1872
    %vm1874 = vweird.f32 %v1852
    %vm1875 = vweird.f32 %v1869
    %vm1876 = vmor %vm1874, %vm1875
    %v1877 = vsel %vm1876, %v1869, %v1873
    %v1878 = vand.u32 2147483647, %v1852
    %vm1879 = vcmp.eq.f32.partialorder %v1878, 8.507059e+37
    %v1880 = vand.u32 %v1852, 2147483648
    %v1881 = vor.u32 1.1754944e-38, %v1880
    %v1882 = vsel %vm1879, %v1881, %v1877
    %v1883 = vmul.f32 1.0, %v1882
    %v1884 = vrcp.pop %v1853
    %v1885 = vmul.f32 %v1853, %v1884
    %v1886 = vsub.f32 1.0, %v1885
    %v1887 = vmul.f32 %v1884, %v1886
    %v1888 = vadd.f32 %v1884, %v1887
    %vm1889 = vweird.f32 %v1853
    %vm1890 = vweird.f32 %v1884
    %vm1891 = vmor %vm1889, %vm1890
    %v1892 = vsel %vm1891, %v1884, %v1888
    %v1893 = vand.u32 2147483647, %v1853
    %vm1894 = vcmp.eq.f32.partialorder %v1893, 8.507059e+37
    %v1895 = vand.u32 %v1853, 2147483648
    %v1896 = vor.u32 1.1754944e-38, %v1895
    %v1897 = vsel %vm1894, %v1896, %v1892
    %v1898 = vmul.f32 1.0, %v1897
    %v1899 = vtanh.pop %v1840
    %v1900 = vmul.f32 %v1883, %v1761
    %v1901 = vmul.f32 %v1868, %v1899
    %v1902 = vadd.f32 %v1900, %v1901
    %v1903 = vtanh.pop %v1902
    %v1904 = vmul.f32 %v1898, %v1903
    %vm1905 = vcmp.ge.s32.totalorder %v206, 96
    %vm1906 = vmand %vm1905, %vm1611
    %v1907 = vsel %vm1906, %v1904, %v1760
    %v1908 = vld [vmem:[%s4] sm:$0x1]
    %v1910 = vperm.slane %v1908, 0
    %1911 = vrot.lane.b32.xlu0 %v1910, 96
    %v1912 = vpop.permute.xlu0 %1911
    %v1914 = vmul.f32 %v1907, %v1912
    %1916 = vrot.lane.b32.xlu0 %v1914, 32
    %v1917 = vpop.permute.xlu0 %1916
    %vm1919 = vcmask 261120
    %v1920 = vsel %vm1919, %v1917, 0.0
    %1921 = vadd.xlane.f32.xlu0 %v1920
    %v1922 = vpop.xlane.xlu0 %1921
    %v1923 = vld [vmem:[#allocation3] sm:$0x1]
    %v1925 = vperm.slane %v1923, 0
    %v1927 = vadd.f32 %v1922, %v1925
    %vm1928 = vcmask 7168
    %1929 = vst.msk [vmem:[%s6] sm:$0xff] %vm1928, %v1927
    // Predicated region
    $region30: #{tpu_custom_call.1} parent=1 // pred_check
      _
    $region31: #{tpu_custom_call.1} parent=1 // pred_check_branch
      %1931 = sbr.rel (0) target = $region33
    $region32: #{tpu_custom_call.1} parent=1 // pred_region
      _
    $region33: #{tpu_custom_call.1} parent=1 // pred_fallthru
      _
    // Predicated region
    $region34: #{tpu_custom_call.1} parent=1 // pred_check
      _
    $region35: #{tpu_custom_call.1} parent=1 // pred_check_branch
      %1933 = sbr.rel (0) target = $region37
    $region36: #{tpu_custom_call.1} parent=1 // pred_region
      _
    $region37: #{tpu_custom_call.1} parent=1 // pred_fallthru
      _
    %1934 = vsyncpa [#allocation5], 1

</llo_original>
